<compile_context>
chip_gen: v7x
topology: tpu7x:2x2x1
jax: 0.10.0
libtpu: 0.0.40
codegen_flags: <defaults>
</compile_context>

<pallas_src>
import jax
import jax.numpy as jnp
from jax import lax
from jax.experimental import pallas as pl
from jax.experimental.pallas import tpu as pltpu

HIDDEN_SIZE = 50
INPUT_SIZE = 1
OUTPUT_SIZE = 1

GATE_LANES = 128     # Hp: each gate padded to a full 128-lane group
BATCH_SUBLANES = 8   # Bp: batch padded to a full sublane group
# Kernel lane-group order is (i, f, o, g); PyTorch block order is (i, f, g, o).
_GATE_SRC = (0, 1, 3, 2)


def lstm_fc_kernel(x_ref, wih_ref, whh_ref, b_ref, wfc_ref, bfc_ref, out_ref):
    """Whole forward pass in one invocation.

    x_ref   : (T*Bp, 1)   inputs; rows [t*Bp, t*Bp+B) hold x[t, :], rest zero
    wih_ref : (1, 4*Hp)   W_ih row (input_size == 1), gate k in lanes [k*Hp, k*Hp+H)
    whh_ref : (Hp, 4*Hp)  W_hh^T, same lane layout, padded rows/lanes zero
    b_ref   : (1, 4*Hp)   b_ih + b_hh, same lane layout
    wfc_ref : (1, Hp)     fc weight row (zero-padded)
    bfc_ref : (1, O)      fc bias
    out_ref : (B, O)      fc(h_T)
    """
    Bp = BATCH_SUBLANES
    Hp = whh_ref.shape[0]
    T = x_ref.shape[0] // Bp
    B = out_ref.shape[0]

    h0 = jnp.zeros((Bp, Hp), jnp.float32)
    c0 = jnp.zeros((Bp, Hp), jnp.float32)

    def step(t, carry):
        h, c = carry
        row = pl.multiple_of(t * Bp, Bp)              # sublane-aligned start
        x_col = x_ref[pl.ds(row, Bp), :]              # (Bp, 1)
        # Input projection via VPU broadcast (I == 1) + recurrent MXU matmul.
        gates = (x_col * wih_ref[...] + b_ref[...]
                 + jnp.dot(h, whh_ref[...], preferred_element_type=jnp.float32))
        # Lane layout i, f, o, g: one contiguous sigmoid over the first 3 groups.
        sig = jax.nn.sigmoid(gates[:, :3 * Hp])
        i_g = sig[:, 0 * Hp:1 * Hp]
        f_g = sig[:, 1 * Hp:2 * Hp]
        o_g = sig[:, 2 * Hp:3 * Hp]
        g_g = jnp.tanh(gates[:, 3 * Hp:4 * Hp])
        c_new = f_g * c + i_g * g_g
        h_new = o_g * jnp.tanh(c_new)
        return h_new, c_new

    unroll = True if T <= 16 else 8
    h_last, _ = lax.fori_loop(0, T, step, (h0, c0), unroll=unroll)

    # fc(lstm_out[-1]) with O == 1: VPU multiply + lane (XLU) reduction.
    fc = jnp.sum(h_last * wfc_ref[...], axis=-1, keepdims=True)   # (Bp, 1)
    out_ref[...] = fc[:B, :] + bfc_ref[...]


def prepare_lstm_params(w_ih, w_hh, b_ih, b_hh, w_fc, b_fc):
    """One-time parameter layout prep (call once at load time, NOT per forward).

    Scatters each gate into its own 128-lane group in the order (i, f, o, g).
    Padded rows/lanes are exactly zero, preserving the recurrence invariant.
    """
    H = w_hh.shape[1]
    I = w_ih.shape[1]
    assert I == 1, "broadcast input-projection path assumes input_size == 1"
    Hp = GATE_LANES
    Gp = 4 * Hp
    f32 = jnp.float32

    wih_t = w_ih.T.astype(f32)            # (1, 4H)
    whh_t = w_hh.T.astype(f32)            # (H, 4H)
    bias = (b_ih + b_hh).astype(f32)      # (4H,)

    wih_row = jnp.zeros((1, Gp), f32)
    whh_pad = jnp.zeros((Hp, Gp), f32)
    b_pad = jnp.zeros((1, Gp), f32)
    for k, src in enumerate(_GATE_SRC):   # kernel group k <- torch block src
        wih_row = wih_row.at[0, k * Hp:k * Hp + H].set(wih_t[0, src * H:(src + 1) * H])
        whh_pad = whh_pad.at[:H, k * Hp:k * Hp + H].set(whh_t[:, src * H:(src + 1) * H])
        b_pad = b_pad.at[0, k * Hp:k * Hp + H].set(bias[src * H:(src + 1) * H])
    wfc_pad = jnp.zeros((1, Hp), f32).at[0, :H].set(w_fc[0].astype(f32))
    bfc = b_fc.reshape(1, -1).astype(f32)
    return wih_row, whh_pad, b_pad, wfc_pad, bfc


def lstm_model_forward(x, wih_row, whh_pad, b_pad, wfc_pad, bfc):
    """x: (T, B, 1) time-major (PyTorch batch_first=False). Returns (B, O)."""
    T, B, I = x.shape
    assert I == 1, "kernel input-projection path assumes input_size == 1"
    Bp = BATCH_SUBLANES
    assert B <= Bp, "pad/shard batch beyond 8 rows before calling the kernel"
    Hp = whh_pad.shape[0]
    Gp = whh_pad.shape[1]
    O = bfc.shape[1]
    assert O == 1, "fc lane-reduction path assumes output_size == 1"

    # Only per-call data prep: pad batch rows to a full sublane group (tiny).
    x_pad = (jnp.zeros((T, Bp), jnp.float32)
             .at[:, :B].set(x.reshape(T, B).astype(jnp.float32))
             .reshape(T * Bp, 1))

    grid_spec = pltpu.PrefetchScalarGridSpec(
        num_scalar_prefetch=0,
        grid=(1,),                                       # single invocation
        in_specs=[
            pl.BlockSpec((T * Bp, 1), lambda i: (0, 0)),  # x (all timesteps)
            pl.BlockSpec((1, Gp), lambda i: (0, 0)),      # W_ih row
            pl.BlockSpec((Hp, Gp), lambda i: (0, 0)),     # W_hh^T (padded)
            pl.BlockSpec((1, Gp), lambda i: (0, 0)),      # fused bias
            pl.BlockSpec((1, Hp), lambda i: (0, 0)),      # fc weight row
            pl.BlockSpec((1, O), lambda i: (0, 0)),       # fc bias
        ],
        out_specs=pl.BlockSpec((B, O), lambda i: (0, 0)),
    )

    return pl.pallas_call(
        lstm_fc_kernel,
        out_shape=jax.ShapeDtypeStruct((B, O), jnp.float32),
        grid_spec=grid_spec,
        compiler_params=pltpu.CompilerParams(
            dimension_semantics=("arbitrary",)),          # recurrence: sequential
    )(x_pad, wih_row, whh_pad, b_pad, wfc_pad, bfc)


def lstm_model_reference(x, w_ih, w_hh, b_ih, b_hh, w_fc, b_fc):
    """Pure-JAX reference matching torch.nn.LSTM + Linear semantics."""
    T, B, I = x.shape
    H = w_hh.shape[1]

    def step(carry, x_t):
        h, c = carry
        gates = x_t @ w_ih.T + b_ih + h @ w_hh.T + b_hh
        i = jax.nn.sigmoid(gates[:, 0 * H:1 * H])
        f = jax.nn.sigmoid(gates[:, 1 * H:2 * H])
        g = jnp.tanh(gates[:, 2 * H:3 * H])
        o = jax.nn.sigmoid(gates[:, 3 * H:4 * H])
        c = f * c + i * g
        h = o * jnp.tanh(c)
        return (h, c), h

    h0 = jnp.zeros((B, H), jnp.float32)
    c0 = jnp.zeros((B, H), jnp.float32)
    (h_last, _), _ = jax.lax.scan(step, (h0, c0), x)
    return h_last @ w_fc.T + b_fc


if __name__ == "__main__":
    seq_len, batch = 8, 2
    H, I, O = HIDDEN_SIZE, INPUT_SIZE, OUTPUT_SIZE

    key = jax.random.PRNGKey(0)
    kx, k1, k2, k3, k4, k5, k6 = jax.random.split(key, 7)

    # Deterministic parameter init (uniform(-1/sqrt(H), 1/sqrt(H)), like PyTorch).
    s = 1.0 / jnp.sqrt(jnp.float32(H))
    w_ih = jax.random.uniform(k1, (4 * H, I), jnp.float32, -s, s)
    w_hh = jax.random.uniform(k2, (4 * H, H), jnp.float32, -s, s)
    b_ih = jax.random.uniform(k3, (4 * H,), jnp.float32, -s, s)
    b_hh = jax.random.uniform(k4, (4 * H,), jnp.float32, -s, s)
    w_fc = jax.random.uniform(k5, (O, H), jnp.float32, -s, s)
    b_fc = jax.random.uniform(k6, (O,), jnp.float32, -s, s)

    x = jax.random.normal(kx, (seq_len, batch, I), jnp.float32)

    # One-time parameter layout prep (off the per-call hot path).
    packed = prepare_lstm_params(w_ih, w_hh, b_ih, b_hh, w_fc, b_fc)
    packed = jax.block_until_ready(packed)

    forward = jax.jit(lstm_model_forward)
    out = forward(x, *packed)
    out = jax.block_until_ready(out)

    ref = lstm_model_reference(x, w_ih, w_hh, b_ih, b_hh, w_fc, b_fc)
    assert out.shape == (batch, O)
    assert jnp.allclose(out, ref, atol=1e-5, rtol=1e-5), (out, ref)

    print("KERNEL_OK")
</pallas_src>

<mosaic_0001>
module attributes {stable_mosaic.version = 11 : i64} {
  func.func @lstm_fc_kernel(%arg0: i32, %arg1: memref<64x1xf32, #tpu.memory_space<vmem>>, %arg2: memref<1x512xf32, #tpu.memory_space<vmem>>, %arg3: memref<128x512xf32, #tpu.memory_space<vmem>>, %arg4: memref<1x512xf32, #tpu.memory_space<vmem>>, %arg5: memref<1x128xf32, #tpu.memory_space<vmem>>, %arg6: memref<1x1xf32, #tpu.memory_space<vmem>>, %arg7: memref<2x1xf32, #tpu.memory_space<vmem>>) attributes {dimension_semantics = [#tpu.dimension_semantics<arbitrary>], iteration_bounds = array<i64: 1>, scalar_prefetch = 0 : i64, scratch_operands = 0 : i64, tpu.core_type = #tpu.core_type<tc>, window_params = [{pipeline_mode = #tpu.pipeline_mode<synchronous>, transform_indices = @transform_0, window_bounds = array<i64: 64, 1>}, {pipeline_mode = #tpu.pipeline_mode<synchronous>, transform_indices = @transform_1, window_bounds = array<i64: 1, 512>}, {pipeline_mode = #tpu.pipeline_mode<synchronous>, transform_indices = @transform_2, window_bounds = array<i64: 128, 512>}, {pipeline_mode = #tpu.pipeline_mode<synchronous>, transform_indices = @transform_3, window_bounds = array<i64: 1, 512>}, {pipeline_mode = #tpu.pipeline_mode<synchronous>, transform_indices = @transform_4, window_bounds = array<i64: 1, 128>}, {pipeline_mode = #tpu.pipeline_mode<synchronous>, transform_indices = @transform_5, window_bounds = array<i64: 1, 1>}, {pipeline_mode = #tpu.pipeline_mode<synchronous>, transform_indices = @transform_6, window_bounds = array<i64: 2, 1>}]} {
    %cst = arith.constant 0.000000e+00 : f32
    %0 = vector.broadcast %cst : f32 to vector<8x128xf32>
    %cst_0 = arith.constant 0.000000e+00 : f32
    %1 = vector.broadcast %cst_0 : f32 to vector<8x128xf32>
    %c0_i32 = arith.constant 0 : i32
    %c8_i32 = arith.constant 8 : i32
    %2 = arith.muli %c0_i32, %c8_i32 : i32
    %3 = tpu.assume_multiple %2, 8 : i32
    %4 = arith.index_cast %3 : i32 to index
    %c0 = arith.constant 0 : index
    %5 = vector.load %arg1[%4, %c0] : memref<64x1xf32, #tpu.memory_space<vmem>>, vector<8x1xf32>
    %c0_1 = arith.constant 0 : index
    %c0_2 = arith.constant 0 : index
    %6 = vector.load %arg2[%c0_1, %c0_2] : memref<1x512xf32, #tpu.memory_space<vmem>>, vector<1x512xf32>
    %7 = vector.broadcast %5 : vector<8x1xf32> to vector<8x512xf32>
    %8 = vector.broadcast %6 : vector<1x512xf32> to vector<8x512xf32>
    %9 = arith.mulf %7, %8 : vector<8x512xf32>
    %c0_3 = arith.constant 0 : index
    %c0_4 = arith.constant 0 : index
    %10 = vector.load %arg4[%c0_3, %c0_4] : memref<1x512xf32, #tpu.memory_space<vmem>>, vector<1x512xf32>
    %11 = vector.broadcast %10 : vector<1x512xf32> to vector<8x512xf32>
    %12 = arith.addf %9, %11 : vector<8x512xf32>
    %c0_5 = arith.constant 0 : index
    %c0_6 = arith.constant 0 : index
    %13 = vector.load %arg3[%c0_5, %c0_6] : memref<128x512xf32, #tpu.memory_space<vmem>>, vector<128x512xf32>
    %cst_7 = arith.constant dense<0.000000e+00> : vector<8x512xf32>
    %14 = tpu.matmul %0, %13, %cst_7 {dimension_numbers = #tpu.dot_dimension_numbers<[1], [0], [0], [1], [0, 0, 1, 1], [], []>} : vector<8x128xf32>, vector<128x512xf32>, vector<8x512xf32> -> vector<8x512xf32>
    %15 = arith.addf %12, %14 : vector<8x512xf32>
    %16 = vector.extract_strided_slice %15 {offsets = [0, 0], sizes = [8, 384], strides = [1, 1]} : vector<8x512xf32> to vector<8x384xf32>
    %17 = arith.negf %16 : vector<8x384xf32>
    %18 = math.exp %17 : vector<8x384xf32>
    %cst_8 = arith.constant 1.000000e+00 : f32
    %19 = vector.broadcast %cst_8 : f32 to vector<8x384xf32>
    %20 = arith.addf %19, %18 : vector<8x384xf32>
    %21 = arith.divf %19, %20 : vector<8x384xf32>
    %22 = vector.extract_strided_slice %21 {offsets = [0, 0], sizes = [8, 128], strides = [1, 1]} : vector<8x384xf32> to vector<8x128xf32>
    %23 = vector.extract_strided_slice %21 {offsets = [0, 128], sizes = [8, 128], strides = [1, 1]} : vector<8x384xf32> to vector<8x128xf32>
    %24 = vector.extract_strided_slice %21 {offsets = [0, 256], sizes = [8, 128], strides = [1, 1]} : vector<8x384xf32> to vector<8x128xf32>
    %25 = vector.extract_strided_slice %15 {offsets = [0, 384], sizes = [8, 128], strides = [1, 1]} : vector<8x512xf32> to vector<8x128xf32>
    %26 = math.tanh %25 : vector<8x128xf32>
    %27 = arith.mulf %23, %1 : vector<8x128xf32>
    %28 = arith.mulf %22, %26 : vector<8x128xf32>
    %29 = arith.addf %27, %28 : vector<8x128xf32>
    %30 = math.tanh %29 : vector<8x128xf32>
    %31 = arith.mulf %24, %30 : vector<8x128xf32>
    %c1_i32 = arith.constant 1 : i32
    %c8_i32_9 = arith.constant 8 : i32
    %32 = arith.muli %c1_i32, %c8_i32_9 : i32
    %33 = tpu.assume_multiple %32, 8 : i32
    %34 = arith.index_cast %33 : i32 to index
    %c0_10 = arith.constant 0 : index
    %35 = vector.load %arg1[%34, %c0_10] : memref<64x1xf32, #tpu.memory_space<vmem>>, vector<8x1xf32>
    %c0_11 = arith.constant 0 : index
    %c0_12 = arith.constant 0 : index
    %36 = vector.load %arg2[%c0_11, %c0_12] : memref<1x512xf32, #tpu.memory_space<vmem>>, vector<1x512xf32>
    %37 = vector.broadcast %35 : vector<8x1xf32> to vector<8x512xf32>
    %38 = vector.broadcast %36 : vector<1x512xf32> to vector<8x512xf32>
    %39 = arith.mulf %37, %38 : vector<8x512xf32>
    %c0_13 = arith.constant 0 : index
    %c0_14 = arith.constant 0 : index
    %40 = vector.load %arg4[%c0_13, %c0_14] : memref<1x512xf32, #tpu.memory_space<vmem>>, vector<1x512xf32>
    %41 = vector.broadcast %40 : vector<1x512xf32> to vector<8x512xf32>
    %42 = arith.addf %39, %41 : vector<8x512xf32>
    %c0_15 = arith.constant 0 : index
    %c0_16 = arith.constant 0 : index
    %43 = vector.load %arg3[%c0_15, %c0_16] : memref<128x512xf32, #tpu.memory_space<vmem>>, vector<128x512xf32>
    %cst_17 = arith.constant dense<0.000000e+00> : vector<8x512xf32>
    %44 = tpu.matmul %31, %43, %cst_17 {dimension_numbers = #tpu.dot_dimension_numbers<[1], [0], [0], [1], [0, 0, 1, 1], [], []>} : vector<8x128xf32>, vector<128x512xf32>, vector<8x512xf32> -> vector<8x512xf32>
    %45 = arith.addf %42, %44 : vector<8x512xf32>
    %46 = vector.extract_strided_slice %45 {offsets = [0, 0], sizes = [8, 384], strides = [1, 1]} : vector<8x512xf32> to vector<8x384xf32>
    %47 = arith.negf %46 : vector<8x384xf32>
    %48 = math.exp %47 : vector<8x384xf32>
    %cst_18 = arith.constant 1.000000e+00 : f32
    %49 = vector.broadcast %cst_18 : f32 to vector<8x384xf32>
    %50 = arith.addf %49, %48 : vector<8x384xf32>
    %51 = arith.divf %49, %50 : vector<8x384xf32>
    %52 = vector.extract_strided_slice %51 {offsets = [0, 0], sizes = [8, 128], strides = [1, 1]} : vector<8x384xf32> to vector<8x128xf32>
    %53 = vector.extract_strided_slice %51 {offsets = [0, 128], sizes = [8, 128], strides = [1, 1]} : vector<8x384xf32> to vector<8x128xf32>
    %54 = vector.extract_strided_slice %51 {offsets = [0, 256], sizes = [8, 128], strides = [1, 1]} : vector<8x384xf32> to vector<8x128xf32>
    %55 = vector.extract_strided_slice %45 {offsets = [0, 384], sizes = [8, 128], strides = [1, 1]} : vector<8x512xf32> to vector<8x128xf32>
    %56 = math.tanh %55 : vector<8x128xf32>
    %57 = arith.mulf %53, %29 : vector<8x128xf32>
    %58 = arith.mulf %52, %56 : vector<8x128xf32>
    %59 = arith.addf %57, %58 : vector<8x128xf32>
    %60 = math.tanh %59 : vector<8x128xf32>
    %61 = arith.mulf %54, %60 : vector<8x128xf32>
    %c2_i32 = arith.constant 2 : i32
    %c8_i32_19 = arith.constant 8 : i32
    %62 = arith.muli %c2_i32, %c8_i32_19 : i32
    %63 = tpu.assume_multiple %62, 8 : i32
    %64 = arith.index_cast %63 : i32 to index
    %c0_20 = arith.constant 0 : index
    %65 = vector.load %arg1[%64, %c0_20] : memref<64x1xf32, #tpu.memory_space<vmem>>, vector<8x1xf32>
    %c0_21 = arith.constant 0 : index
    %c0_22 = arith.constant 0 : index
    %66 = vector.load %arg2[%c0_21, %c0_22] : memref<1x512xf32, #tpu.memory_space<vmem>>, vector<1x512xf32>
    %67 = vector.broadcast %65 : vector<8x1xf32> to vector<8x512xf32>
    %68 = vector.broadcast %66 : vector<1x512xf32> to vector<8x512xf32>
    %69 = arith.mulf %67, %68 : vector<8x512xf32>
    %c0_23 = arith.constant 0 : index
    %c0_24 = arith.constant 0 : index
    %70 = vector.load %arg4[%c0_23, %c0_24] : memref<1x512xf32, #tpu.memory_space<vmem>>, vector<1x512xf32>
    %71 = vector.broadcast %70 : vector<1x512xf32> to vector<8x512xf32>
    %72 = arith.addf %69, %71 : vector<8x512xf32>
    %c0_25 = arith.constant 0 : index
    %c0_26 = arith.constant 0 : index
    %73 = vector.load %arg3[%c0_25, %c0_26] : memref<128x512xf32, #tpu.memory_space<vmem>>, vector<128x512xf32>
    %cst_27 = arith.constant dense<0.000000e+00> : vector<8x512xf32>
    %74 = tpu.matmul %61, %73, %cst_27 {dimension_numbers = #tpu.dot_dimension_numbers<[1], [0], [0], [1], [0, 0, 1, 1], [], []>} : vector<8x128xf32>, vector<128x512xf32>, vector<8x512xf32> -> vector<8x512xf32>
    %75 = arith.addf %72, %74 : vector<8x512xf32>
    %76 = vector.extract_strided_slice %75 {offsets = [0, 0], sizes = [8, 384], strides = [1, 1]} : vector<8x512xf32> to vector<8x384xf32>
    %77 = arith.negf %76 : vector<8x384xf32>
    %78 = math.exp %77 : vector<8x384xf32>
    %cst_28 = arith.constant 1.000000e+00 : f32
    %79 = vector.broadcast %cst_28 : f32 to vector<8x384xf32>
    %80 = arith.addf %79, %78 : vector<8x384xf32>
    %81 = arith.divf %79, %80 : vector<8x384xf32>
    %82 = vector.extract_strided_slice %81 {offsets = [0, 0], sizes = [8, 128], strides = [1, 1]} : vector<8x384xf32> to vector<8x128xf32>
    %83 = vector.extract_strided_slice %81 {offsets = [0, 128], sizes = [8, 128], strides = [1, 1]} : vector<8x384xf32> to vector<8x128xf32>
    %84 = vector.extract_strided_slice %81 {offsets = [0, 256], sizes = [8, 128], strides = [1, 1]} : vector<8x384xf32> to vector<8x128xf32>
    %85 = vector.extract_strided_slice %75 {offsets = [0, 384], sizes = [8, 128], strides = [1, 1]} : vector<8x512xf32> to vector<8x128xf32>
    %86 = math.tanh %85 : vector<8x128xf32>
    %87 = arith.mulf %83, %59 : vector<8x128xf32>
    %88 = arith.mulf %82, %86 : vector<8x128xf32>
    %89 = arith.addf %87, %88 : vector<8x128xf32>
    %90 = math.tanh %89 : vector<8x128xf32>
    %91 = arith.mulf %84, %90 : vector<8x128xf32>
    %c3_i32 = arith.constant 3 : i32
    %c8_i32_29 = arith.constant 8 : i32
    %92 = arith.muli %c3_i32, %c8_i32_29 : i32
    %93 = tpu.assume_multiple %92, 8 : i32
    %94 = arith.index_cast %93 : i32 to index
    %c0_30 = arith.constant 0 : index
    %95 = vector.load %arg1[%94, %c0_30] : memref<64x1xf32, #tpu.memory_space<vmem>>, vector<8x1xf32>
    %c0_31 = arith.constant 0 : index
    %c0_32 = arith.constant 0 : index
    %96 = vector.load %arg2[%c0_31, %c0_32] : memref<1x512xf32, #tpu.memory_space<vmem>>, vector<1x512xf32>
    %97 = vector.broadcast %95 : vector<8x1xf32> to vector<8x512xf32>
    %98 = vector.broadcast %96 : vector<1x512xf32> to vector<8x512xf32>
    %99 = arith.mulf %97, %98 : vector<8x512xf32>
    %c0_33 = arith.constant 0 : index
    %c0_34 = arith.constant 0 : index
    %100 = vector.load %arg4[%c0_33, %c0_34] : memref<1x512xf32, #tpu.memory_space<vmem>>, vector<1x512xf32>
    %101 = vector.broadcast %100 : vector<1x512xf32> to vector<8x512xf32>
    %102 = arith.addf %99, %101 : vector<8x512xf32>
    %c0_35 = arith.constant 0 : index
    %c0_36 = arith.constant 0 : index
    %103 = vector.load %arg3[%c0_35, %c0_36] : memref<128x512xf32, #tpu.memory_space<vmem>>, vector<128x512xf32>
    %cst_37 = arith.constant dense<0.000000e+00> : vector<8x512xf32>
    %104 = tpu.matmul %91, %103, %cst_37 {dimension_numbers = #tpu.dot_dimension_numbers<[1], [0], [0], [1], [0, 0, 1, 1], [], []>} : vector<8x128xf32>, vector<128x512xf32>, vector<8x512xf32> -> vector<8x512xf32>
    %105 = arith.addf %102, %104 : vector<8x512xf32>
    %106 = vector.extract_strided_slice %105 {offsets = [0, 0], sizes = [8, 384], strides = [1, 1]} : vector<8x512xf32> to vector<8x384xf32>
    %107 = arith.negf %106 : vector<8x384xf32>
    %108 = math.exp %107 : vector<8x384xf32>
    %cst_38 = arith.constant 1.000000e+00 : f32
    %109 = vector.broadcast %cst_38 : f32 to vector<8x384xf32>
    %110 = arith.addf %109, %108 : vector<8x384xf32>
    %111 = arith.divf %109, %110 : vector<8x384xf32>
    %112 = vector.extract_strided_slice %111 {offsets = [0, 0], sizes = [8, 128], strides = [1, 1]} : vector<8x384xf32> to vector<8x128xf32>
    %113 = vector.extract_strided_slice %111 {offsets = [0, 128], sizes = [8, 128], strides = [1, 1]} : vector<8x384xf32> to vector<8x128xf32>
    %114 = vector.extract_strided_slice %111 {offsets = [0, 256], sizes = [8, 128], strides = [1, 1]} : vector<8x384xf32> to vector<8x128xf32>
    %115 = vector.extract_strided_slice %105 {offsets = [0, 384], sizes = [8, 128], strides = [1, 1]} : vector<8x512xf32> to vector<8x128xf32>
    %116 = math.tanh %115 : vector<8x128xf32>
    %117 = arith.mulf %113, %89 : vector<8x128xf32>
    %118 = arith.mulf %112, %116 : vector<8x128xf32>
    %119 = arith.addf %117, %118 : vector<8x128xf32>
    %120 = math.tanh %119 : vector<8x128xf32>
    %121 = arith.mulf %114, %120 : vector<8x128xf32>
    %c4_i32 = arith.constant 4 : i32
    %c8_i32_39 = arith.constant 8 : i32
    %122 = arith.muli %c4_i32, %c8_i32_39 : i32
    %123 = tpu.assume_multiple %122, 8 : i32
    %124 = arith.index_cast %123 : i32 to index
    %c0_40 = arith.constant 0 : index
    %125 = vector.load %arg1[%124, %c0_40] : memref<64x1xf32, #tpu.memory_space<vmem>>, vector<8x1xf32>
    %c0_41 = arith.constant 0 : index
    %c0_42 = arith.constant 0 : index
    %126 = vector.load %arg2[%c0_41, %c0_42] : memref<1x512xf32, #tpu.memory_space<vmem>>, vector<1x512xf32>
    %127 = vector.broadcast %125 : vector<8x1xf32> to vector<8x512xf32>
    %128 = vector.broadcast %126 : vector<1x512xf32> to vector<8x512xf32>
    %129 = arith.mulf %127, %128 : vector<8x512xf32>
    %c0_43 = arith.constant 0 : index
    %c0_44 = arith.constant 0 : index
    %130 = vector.load %arg4[%c0_43, %c0_44] : memref<1x512xf32, #tpu.memory_space<vmem>>, vector<1x512xf32>
    %131 = vector.broadcast %130 : vector<1x512xf32> to vector<8x512xf32>
    %132 = arith.addf %129, %131 : vector<8x512xf32>
    %c0_45 = arith.constant 0 : index
    %c0_46 = arith.constant 0 : index
    %133 = vector.load %arg3[%c0_45, %c0_46] : memref<128x512xf32, #tpu.memory_space<vmem>>, vector<128x512xf32>
    %cst_47 = arith.constant dense<0.000000e+00> : vector<8x512xf32>
    %134 = tpu.matmul %121, %133, %cst_47 {dimension_numbers = #tpu.dot_dimension_numbers<[1], [0], [0], [1], [0, 0, 1, 1], [], []>} : vector<8x128xf32>, vector<128x512xf32>, vector<8x512xf32> -> vector<8x512xf32>
    %135 = arith.addf %132, %134 : vector<8x512xf32>
    %136 = vector.extract_strided_slice %135 {offsets = [0, 0], sizes = [8, 384], strides = [1, 1]} : vector<8x512xf32> to vector<8x384xf32>
    %137 = arith.negf %136 : vector<8x384xf32>
    %138 = math.exp %137 : vector<8x384xf32>
    %cst_48 = arith.constant 1.000000e+00 : f32
    %139 = vector.broadcast %cst_48 : f32 to vector<8x384xf32>
    %140 = arith.addf %139, %138 : vector<8x384xf32>
    %141 = arith.divf %139, %140 : vector<8x384xf32>
    %142 = vector.extract_strided_slice %141 {offsets = [0, 0], sizes = [8, 128], strides = [1, 1]} : vector<8x384xf32> to vector<8x128xf32>
    %143 = vector.extract_strided_slice %141 {offsets = [0, 128], sizes = [8, 128], strides = [1, 1]} : vector<8x384xf32> to vector<8x128xf32>
    %144 = vector.extract_strided_slice %141 {offsets = [0, 256], sizes = [8, 128], strides = [1, 1]} : vector<8x384xf32> to vector<8x128xf32>
    %145 = vector.extract_strided_slice %135 {offsets = [0, 384], sizes = [8, 128], strides = [1, 1]} : vector<8x512xf32> to vector<8x128xf32>
    %146 = math.tanh %145 : vector<8x128xf32>
    %147 = arith.mulf %143, %119 : vector<8x128xf32>
    %148 = arith.mulf %142, %146 : vector<8x128xf32>
    %149 = arith.addf %147, %148 : vector<8x128xf32>
    %150 = math.tanh %149 : vector<8x128xf32>
    %151 = arith.mulf %144, %150 : vector<8x128xf32>
    %c5_i32 = arith.constant 5 : i32
    %c8_i32_49 = arith.constant 8 : i32
    %152 = arith.muli %c5_i32, %c8_i32_49 : i32
    %153 = tpu.assume_multiple %152, 8 : i32
    %154 = arith.index_cast %153 : i32 to index
    %c0_50 = arith.constant 0 : index
    %155 = vector.load %arg1[%154, %c0_50] : memref<64x1xf32, #tpu.memory_space<vmem>>, vector<8x1xf32>
    %c0_51 = arith.constant 0 : index
    %c0_52 = arith.constant 0 : index
    %156 = vector.load %arg2[%c0_51, %c0_52] : memref<1x512xf32, #tpu.memory_space<vmem>>, vector<1x512xf32>
    %157 = vector.broadcast %155 : vector<8x1xf32> to vector<8x512xf32>
    %158 = vector.broadcast %156 : vector<1x512xf32> to vector<8x512xf32>
    %159 = arith.mulf %157, %158 : vector<8x512xf32>
    %c0_53 = arith.constant 0 : index
    %c0_54 = arith.constant 0 : index
    %160 = vector.load %arg4[%c0_53, %c0_54] : memref<1x512xf32, #tpu.memory_space<vmem>>, vector<1x512xf32>
    %161 = vector.broadcast %160 : vector<1x512xf32> to vector<8x512xf32>
    %162 = arith.addf %159, %161 : vector<8x512xf32>
    %c0_55 = arith.constant 0 : index
    %c0_56 = arith.constant 0 : index
    %163 = vector.load %arg3[%c0_55, %c0_56] : memref<128x512xf32, #tpu.memory_space<vmem>>, vector<128x512xf32>
    %cst_57 = arith.constant dense<0.000000e+00> : vector<8x512xf32>
    %164 = tpu.matmul %151, %163, %cst_57 {dimension_numbers = #tpu.dot_dimension_numbers<[1], [0], [0], [1], [0, 0, 1, 1], [], []>} : vector<8x128xf32>, vector<128x512xf32>, vector<8x512xf32> -> vector<8x512xf32>
    %165 = arith.addf %162, %164 : vector<8x512xf32>
    %166 = vector.extract_strided_slice %165 {offsets = [0, 0], sizes = [8, 384], strides = [1, 1]} : vector<8x512xf32> to vector<8x384xf32>
    %167 = arith.negf %166 : vector<8x384xf32>
    %168 = math.exp %167 : vector<8x384xf32>
    %cst_58 = arith.constant 1.000000e+00 : f32
    %169 = vector.broadcast %cst_58 : f32 to vector<8x384xf32>
    %170 = arith.addf %169, %168 : vector<8x384xf32>
    %171 = arith.divf %169, %170 : vector<8x384xf32>
    %172 = vector.extract_strided_slice %171 {offsets = [0, 0], sizes = [8, 128], strides = [1, 1]} : vector<8x384xf32> to vector<8x128xf32>
    %173 = vector.extract_strided_slice %171 {offsets = [0, 128], sizes = [8, 128], strides = [1, 1]} : vector<8x384xf32> to vector<8x128xf32>
    %174 = vector.extract_strided_slice %171 {offsets = [0, 256], sizes = [8, 128], strides = [1, 1]} : vector<8x384xf32> to vector<8x128xf32>
    %175 = vector.extract_strided_slice %165 {offsets = [0, 384], sizes = [8, 128], strides = [1, 1]} : vector<8x512xf32> to vector<8x128xf32>
    %176 = math.tanh %175 : vector<8x128xf32>
    %177 = arith.mulf %173, %149 : vector<8x128xf32>
    %178 = arith.mulf %172, %176 : vector<8x128xf32>
    %179 = arith.addf %177, %178 : vector<8x128xf32>
    %180 = math.tanh %179 : vector<8x128xf32>
    %181 = arith.mulf %174, %180 : vector<8x128xf32>
    %c6_i32 = arith.constant 6 : i32
    %c8_i32_59 = arith.constant 8 : i32
    %182 = arith.muli %c6_i32, %c8_i32_59 : i32
    %183 = tpu.assume_multiple %182, 8 : i32
    %184 = arith.index_cast %183 : i32 to index
    %c0_60 = arith.constant 0 : index
    %185 = vector.load %arg1[%184, %c0_60] : memref<64x1xf32, #tpu.memory_space<vmem>>, vector<8x1xf32>
    %c0_61 = arith.constant 0 : index
    %c0_62 = arith.constant 0 : index
    %186 = vector.load %arg2[%c0_61, %c0_62] : memref<1x512xf32, #tpu.memory_space<vmem>>, vector<1x512xf32>
    %187 = vector.broadcast %185 : vector<8x1xf32> to vector<8x512xf32>
    %188 = vector.broadcast %186 : vector<1x512xf32> to vector<8x512xf32>
    %189 = arith.mulf %187, %188 : vector<8x512xf32>
    %c0_63 = arith.constant 0 : index
    %c0_64 = arith.constant 0 : index
    %190 = vector.load %arg4[%c0_63, %c0_64] : memref<1x512xf32, #tpu.memory_space<vmem>>, vector<1x512xf32>
    %191 = vector.broadcast %190 : vector<1x512xf32> to vector<8x512xf32>
    %192 = arith.addf %189, %191 : vector<8x512xf32>
    %c0_65 = arith.constant 0 : index
    %c0_66 = arith.constant 0 : index
    %193 = vector.load %arg3[%c0_65, %c0_66] : memref<128x512xf32, #tpu.memory_space<vmem>>, vector<128x512xf32>
    %cst_67 = arith.constant dense<0.000000e+00> : vector<8x512xf32>
    %194 = tpu.matmul %181, %193, %cst_67 {dimension_numbers = #tpu.dot_dimension_numbers<[1], [0], [0], [1], [0, 0, 1, 1], [], []>} : vector<8x128xf32>, vector<128x512xf32>, vector<8x512xf32> -> vector<8x512xf32>
    %195 = arith.addf %192, %194 : vector<8x512xf32>
    %196 = vector.extract_strided_slice %195 {offsets = [0, 0], sizes = [8, 384], strides = [1, 1]} : vector<8x512xf32> to vector<8x384xf32>
    %197 = arith.negf %196 : vector<8x384xf32>
    %198 = math.exp %197 : vector<8x384xf32>
    %cst_68 = arith.constant 1.000000e+00 : f32
    %199 = vector.broadcast %cst_68 : f32 to vector<8x384xf32>
    %200 = arith.addf %199, %198 : vector<8x384xf32>
    %201 = arith.divf %199, %200 : vector<8x384xf32>
    %202 = vector.extract_strided_slice %201 {offsets = [0, 0], sizes = [8, 128], strides = [1, 1]} : vector<8x384xf32> to vector<8x128xf32>
    %203 = vector.extract_strided_slice %201 {offsets = [0, 128], sizes = [8, 128], strides = [1, 1]} : vector<8x384xf32> to vector<8x128xf32>
    %204 = vector.extract_strided_slice %201 {offsets = [0, 256], sizes = [8, 128], strides = [1, 1]} : vector<8x384xf32> to vector<8x128xf32>
    %205 = vector.extract_strided_slice %195 {offsets = [0, 384], sizes = [8, 128], strides = [1, 1]} : vector<8x512xf32> to vector<8x128xf32>
    %206 = math.tanh %205 : vector<8x128xf32>
    %207 = arith.mulf %203, %179 : vector<8x128xf32>
    %208 = arith.mulf %202, %206 : vector<8x128xf32>
    %209 = arith.addf %207, %208 : vector<8x128xf32>
    %210 = math.tanh %209 : vector<8x128xf32>
    %211 = arith.mulf %204, %210 : vector<8x128xf32>
    %c7_i32 = arith.constant 7 : i32
    %c8_i32_69 = arith.constant 8 : i32
    %212 = arith.muli %c7_i32, %c8_i32_69 : i32
    %213 = tpu.assume_multiple %212, 8 : i32
    %214 = arith.index_cast %213 : i32 to index
    %c0_70 = arith.constant 0 : index
    %215 = vector.load %arg1[%214, %c0_70] : memref<64x1xf32, #tpu.memory_space<vmem>>, vector<8x1xf32>
    %c0_71 = arith.constant 0 : index
    %c0_72 = arith.constant 0 : index
    %216 = vector.load %arg2[%c0_71, %c0_72] : memref<1x512xf32, #tpu.memory_space<vmem>>, vector<1x512xf32>
    %217 = vector.broadcast %215 : vector<8x1xf32> to vector<8x512xf32>
    %218 = vector.broadcast %216 : vector<1x512xf32> to vector<8x512xf32>
    %219 = arith.mulf %217, %218 : vector<8x512xf32>
    %c0_73 = arith.constant 0 : index
    %c0_74 = arith.constant 0 : index
    %220 = vector.load %arg4[%c0_73, %c0_74] : memref<1x512xf32, #tpu.memory_space<vmem>>, vector<1x512xf32>
    %221 = vector.broadcast %220 : vector<1x512xf32> to vector<8x512xf32>
    %222 = arith.addf %219, %221 : vector<8x512xf32>
    %c0_75 = arith.constant 0 : index
    %c0_76 = arith.constant 0 : index
    %223 = vector.load %arg3[%c0_75, %c0_76] : memref<128x512xf32, #tpu.memory_space<vmem>>, vector<128x512xf32>
    %cst_77 = arith.constant dense<0.000000e+00> : vector<8x512xf32>
    %224 = tpu.matmul %211, %223, %cst_77 {dimension_numbers = #tpu.dot_dimension_numbers<[1], [0], [0], [1], [0, 0, 1, 1], [], []>} : vector<8x128xf32>, vector<128x512xf32>, vector<8x512xf32> -> vector<8x512xf32>
    %225 = arith.addf %222, %224 : vector<8x512xf32>
    %226 = vector.extract_strided_slice %225 {offsets = [0, 0], sizes = [8, 384], strides = [1, 1]} : vector<8x512xf32> to vector<8x384xf32>
    %227 = arith.negf %226 : vector<8x384xf32>
    %228 = math.exp %227 : vector<8x384xf32>
    %cst_78 = arith.constant 1.000000e+00 : f32
    %229 = vector.broadcast %cst_78 : f32 to vector<8x384xf32>
    %230 = arith.addf %229, %228 : vector<8x384xf32>
    %231 = arith.divf %229, %230 : vector<8x384xf32>
    %232 = vector.extract_strided_slice %231 {offsets = [0, 0], sizes = [8, 128], strides = [1, 1]} : vector<8x384xf32> to vector<8x128xf32>
    %233 = vector.extract_strided_slice %231 {offsets = [0, 128], sizes = [8, 128], strides = [1, 1]} : vector<8x384xf32> to vector<8x128xf32>
    %234 = vector.extract_strided_slice %231 {offsets = [0, 256], sizes = [8, 128], strides = [1, 1]} : vector<8x384xf32> to vector<8x128xf32>
    %235 = vector.extract_strided_slice %225 {offsets = [0, 384], sizes = [8, 128], strides = [1, 1]} : vector<8x512xf32> to vector<8x128xf32>
    %236 = math.tanh %235 : vector<8x128xf32>
    %237 = arith.mulf %233, %209 : vector<8x128xf32>
    %238 = arith.mulf %232, %236 : vector<8x128xf32>
    %239 = arith.addf %237, %238 : vector<8x128xf32>
    %240 = math.tanh %239 : vector<8x128xf32>
    %241 = arith.mulf %234, %240 : vector<8x128xf32>
    %c8_i32_79 = arith.constant 8 : i32
    %c0_80 = arith.constant 0 : index
    %c0_81 = arith.constant 0 : index
    %242 = vector.load %arg5[%c0_80, %c0_81] : memref<1x128xf32, #tpu.memory_space<vmem>>, vector<1x128xf32>
    %243 = vector.broadcast %242 : vector<1x128xf32> to vector<8x128xf32>
    %244 = arith.mulf %241, %243 : vector<8x128xf32>
    %cst_82 = arith.constant dense<0.000000e+00> : vector<8xf32>
    %245 = vector.multi_reduction <add>, %244, %cst_82 [1] : vector<8x128xf32> to vector<8xf32>
    %246 = vector.shape_cast %245 : vector<8xf32> to vector<8x1xf32>
    %247 = vector.extract_strided_slice %246 {offsets = [0, 0], sizes = [2, 1], strides = [1, 1]} : vector<8x1xf32> to vector<2x1xf32>
    %c0_83 = arith.constant 0 : index
    %c0_84 = arith.constant 0 : index
    %248 = vector.load %arg6[%c0_83, %c0_84] : memref<1x1xf32, #tpu.memory_space<vmem>>, vector<1x1xf32>
    %249 = vector.broadcast %248 : vector<1x1xf32> to vector<2x1xf32>
    %250 = arith.addf %247, %249 : vector<2x1xf32>
    %c0_85 = arith.constant 0 : index
    %c0_86 = arith.constant 0 : index
    %251 = vector.load %arg7[%c0_85, %c0_86] : memref<2x1xf32, #tpu.memory_space<vmem>>, vector<2x1xf32>
    tpu.vector_store %arg7[%c0_85, %c0_86], %250 {strides = array<i32>} : memref<2x1xf32, #tpu.memory_space<vmem>>, vector<2x1xf32>,
    return
  }
  func.func @transform_0(%arg0: i32) -> (i32, i32) {
    %c0_i32 = arith.constant 0 : i32
    %c0_i32_0 = arith.constant 0 : i32
    %c0_i32_1 = arith.constant 0 : i32
    return %c0_i32, %c0_i32_0 : i32, i32
  }
  func.func @transform_1(%arg0: i32) -> (i32, i32) {
    %c0_i32 = arith.constant 0 : i32
    %c0_i32_0 = arith.constant 0 : i32
    %c0_i32_1 = arith.constant 0 : i32
    return %c0_i32, %c0_i32_0 : i32, i32
  }
  func.func @transform_2(%arg0: i32) -> (i32, i32) {
    %c0_i32 = arith.constant 0 : i32
    %c0_i32_0 = arith.constant 0 : i32
    %c0_i32_1 = arith.constant 0 : i32
    return %c0_i32, %c0_i32_0 : i32, i32
  }
  func.func @transform_3(%arg0: i32) -> (i32, i32) {
    %c0_i32 = arith.constant 0 : i32
    %c0_i32_0 = arith.constant 0 : i32
    %c0_i32_1 = arith.constant 0 : i32
    return %c0_i32, %c0_i32_0 : i32, i32
  }
  func.func @transform_4(%arg0: i32) -> (i32, i32) {
    %c0_i32 = arith.constant 0 : i32
    %c0_i32_0 = arith.constant 0 : i32
    %c0_i32_1 = arith.constant 0 : i32
    return %c0_i32, %c0_i32_0 : i32, i32
  }
  func.func @transform_5(%arg0: i32) -> (i32, i32) {
    %c0_i32 = arith.constant 0 : i32
    %c0_i32_0 = arith.constant 0 : i32
    %c0_i32_1 = arith.constant 0 : i32
    return %c0_i32, %c0_i32_0 : i32, i32
  }
  func.func @transform_6(%arg0: i32) -> (i32, i32) {
    %c0_i32 = arith.constant 0 : i32
    %c0_i32_0 = arith.constant 0 : i32
    %c0_i32_1 = arith.constant 0 : i32
    return %c0_i32, %c0_i32_0 : i32, i32
  }
}

</mosaic_0001>

<llo_original>
// kernel: lstm_model_forward.1
$region0: #{lstm_model_forward.1}
  #allocation0 [shape = 'u32[]', space=smem, size = 0x4, offset = 0x4, fixed_abs, tag = 'smem constant byte address 0x4 - core index']
  #allocation1 [shape = 'u32[144,128]{1,0:T(1,128)}', space=vmem, size = 0x12000, scoped, tag = 'internal scratch']
  #allocation2 [shape = 'f32[1,1]{1,0:T(1,128)S(1)}', space=vmem, size = 0x200, scoped, tag = 'scoped memory for lstm_model_forward.1']
  %s0 = inlined_call_operand.vmem [shape: f32[64,1], index: 0, kind: input, shape index: {}]
  %s1 = inlined_call_operand.vmem [shape: f32[1,512], index: 1, kind: input, shape index: {}]
  %s2 = inlined_call_operand.hbm [shape: f32[128,512], index: 2, kind: input, shape index: {}]
  %s3 = inlined_call_operand.vmem [shape: f32[1,512], index: 3, kind: input, shape index: {}]
  %s4 = inlined_call_operand.vmem [shape: f32[1,128], index: 4, kind: input, shape index: {}]
  %s5 = inlined_call_operand.<no memory space> [shape: f32[1,1], index: 5, kind: input, shape index: {}]
  %s6 = inlined_call_operand.vmem [shape: f32[2,1], index: 6, kind: output, shape index: {}]
  %s7 = sld [smem:[#allocation0]]
  $region38: #{lstm_model_forward.1} parent=0
    _
  %s9 = ssub.s32 1, %s7
  %s10 = scalar_select 0, %s9, %s7
  %v11 = vstv %s5
  %12 = vst [vmem:[#allocation2] sm:$0x1] %v11
  $region1: #{lstm_model_forward.1} parent=0
    #allocation3 [shape = 'u8[262144]{0}', space=vmem, size = 0x40000, scoped, tag = 'input window, operand 2, single buffered']
    #allocation4 [shape = 's32[1]{0}', space=sflag, size = 0x4, scoped, tag = 'scoped memory for lstm_model_forward.1']
    %13 = vsyncpa [#allocation4], 0
    // Predicated region
    $region2: #{lstm_model_forward.1} parent=1 // pred_check
      _
    $region3: #{lstm_model_forward.1} parent=1 // pred_check_branch
      %15 = sbr.rel (0) target = $region5
    $region4: #{lstm_model_forward.1} parent=1 // pred_region
      _
    $region5: #{lstm_model_forward.1} parent=1 // pred_fallthru
      _
    // Predicated region
    $region6: #{lstm_model_forward.1} parent=1 // pred_check
      _
    $region7: #{lstm_model_forward.1} parent=1 // pred_check_branch
      %17 = sbr.rel (0) target = $region9
    $region8: #{lstm_model_forward.1} parent=1 // pred_region
      _
    $region9: #{lstm_model_forward.1} parent=1 // pred_fallthru
      _
    // Predicated region
    $region10: #{lstm_model_forward.1} parent=1 // pred_check
      _
    $region11: #{lstm_model_forward.1} parent=1 // pred_check_branch
      %19 = sbr.rel (0) target = $region13
    $region12: #{lstm_model_forward.1} parent=1 // pred_region
      %s21 = ssub.s32 8192, 8192
      %22 = vsyncadd [#allocation4], %s21
      %s23 = sshll.u32 [#allocation3], 4
      %s24 = int_to_ptr.vmem [resolvable:$true] %s23
      %29 = dma.hbm_to_vmem [thread:$0]  %s2, 8192, %s24, [#allocation4], 512, 512, 32
    $region13: #{lstm_model_forward.1} parent=1 // pred_fallthru
      _
    // Predicated region
    $region14: #{lstm_model_forward.1} parent=1 // pred_check
      _
    $region15: #{lstm_model_forward.1} parent=1 // pred_check_branch
      %31 = sbr.rel (0) target = $region17
    $region16: #{lstm_model_forward.1} parent=1 // pred_region
      _
    $region17: #{lstm_model_forward.1} parent=1 // pred_fallthru
      _
    // Predicated region
    $region18: #{lstm_model_forward.1} parent=1 // pred_check
      _
    $region19: #{lstm_model_forward.1} parent=1 // pred_check_branch
      %33 = sbr.rel (0) target = $region21
    $region20: #{lstm_model_forward.1} parent=1 // pred_region
      _
    $region21: #{lstm_model_forward.1} parent=1 // pred_fallthru
      _
    // Predicated region
    $region22: #{lstm_model_forward.1} parent=1 // pred_check
      _
    $region23: #{lstm_model_forward.1} parent=1 // pred_check_branch
      %35 = sbr.rel (0) target = $region25
    $region24: #{lstm_model_forward.1} parent=1 // pred_region
      _
    $region25: #{lstm_model_forward.1} parent=1 // pred_fallthru
      _
    // Predicated region
    $region26: #{lstm_model_forward.1} parent=1 // pred_check
      _
    $region27: #{lstm_model_forward.1} parent=1 // pred_check_branch
      %37 = sbr.rel (0) target = $region29
    $region28: #{lstm_model_forward.1} parent=1 // pred_region
      %38 = dma.done [#allocation4], 8192
    $region29: #{lstm_model_forward.1} parent=1 // pred_fallthru
      _
    %v39 = vld [vmem:[%s0] sm:$0xff]
    %v40 = vld [vmem:[%s1] sm:$0xf]
    %42 = vset.pattern.permute.xlu0 0
    %43 = vperm.xlu0 %42, %v39
    %v44 = vpop.permute.xlu0 %43
    %v47 = vlaneseq
    %v48 = vshrl.u32 %v47, 7
    %v49 = vsub.s32 0, %v48
    %v50 = vrot.slane %v40, %v49
    %v51 = vlaneseq
    %v52 = vshrl.u32 %v51, 7
    %v53 = vsub.s32 1, %v52
    %v54 = vrot.slane %v40, %v53
    %v55 = vlaneseq
    %v56 = vshrl.u32 %v55, 7
    %v57 = vsub.s32 2, %v56
    %v58 = vrot.slane %v40, %v57
    %v59 = vlaneseq
    %v60 = vshrl.u32 %v59, 7
    %v61 = vsub.s32 3, %v60
    %v62 = vrot.slane %v40, %v61
    %v67 = vmul.f32 %v44, %v50
    %v68 = vmul.f32 %v44, %v54
    %v69 = vmul.f32 %v44, %v58
    %v70 = vmul.f32 %v44, %v62
    %v71 = vld [vmem:[%s3] sm:$0xf]
    %v73 = vlaneseq
    %v74 = vshrl.u32 %v73, 7
    %v75 = vsub.s32 0, %v74
    %v76 = vrot.slane %v71, %v75
    %v77 = vlaneseq
    %v78 = vshrl.u32 %v77, 7
    %v79 = vsub.s32 1, %v78
    %v80 = vrot.slane %v71, %v79
    %v81 = vlaneseq
    %v82 = vshrl.u32 %v81, 7
    %v83 = vsub.s32 2, %v82
    %v84 = vrot.slane %v71, %v83
    %v85 = vlaneseq
    %v86 = vshrl.u32 %v85, 7
    %v87 = vsub.s32 3, %v86
    %v88 = vrot.slane %v71, %v87
    %v93 = vadd.f32 %v67, %v76
    %v94 = vadd.f32 %v68, %v80
    %v95 = vadd.f32 %v69, %v84
    %v96 = vadd.f32 %v70, %v88
    %v97 = vld [vmem:[#allocation3] sm:$0xff]
    %v98 = vld [vmem:[#allocation3 + $0x8] sm:$0xff]
    %v99 = vld [vmem:[#allocation3 + $0x10] sm:$0xff]
    %v100 = vld [vmem:[#allocation3 + $0x18] sm:$0xff]
    %v101 = vld [vmem:[#allocation3 + $0x20] sm:$0xff]
    %v102 = vld [vmem:[#allocation3 + $0x28] sm:$0xff]
    %v103 = vld [vmem:[#allocation3 + $0x30] sm:$0xff]
    %v104 = vld [vmem:[#allocation3 + $0x38] sm:$0xff]
    %v105 = vld [vmem:[#allocation3 + $0x40] sm:$0xff]
    %v106 = vld [vmem:[#allocation3 + $0x48] sm:$0xff]
    %v107 = vld [vmem:[#allocation3 + $0x50] sm:$0xff]
    %v108 = vld [vmem:[#allocation3 + $0x58] sm:$0xff]
    %v109 = vld [vmem:[#allocation3 + $0x60] sm:$0xff]
    %v110 = vld [vmem:[#allocation3 + $0x68] sm:$0xff]
    %v111 = vld [vmem:[#allocation3 + $0x70] sm:$0xff]
    %v112 = vld [vmem:[#allocation3 + $0x78] sm:$0xff]
    %v113 = vld [vmem:[#allocation3 + $0x80] sm:$0xff]
    %v114 = vld [vmem:[#allocation3 + $0x88] sm:$0xff]
    %v115 = vld [vmem:[#allocation3 + $0x90] sm:$0xff]
    %v116 = vld [vmem:[#allocation3 + $0x98] sm:$0xff]
    %v117 = vld [vmem:[#allocation3 + $0xa0] sm:$0xff]
    %v118 = vld [vmem:[#allocation3 + $0xa8] sm:$0xff]
    %v119 = vld [vmem:[#allocation3 + $0xb0] sm:$0xff]
    %v120 = vld [vmem:[#allocation3 + $0xb8] sm:$0xff]
    %v121 = vld [vmem:[#allocation3 + $0xc0] sm:$0xff]
    %v122 = vld [vmem:[#allocation3 + $0xc8] sm:$0xff]
    %v123 = vld [vmem:[#allocation3 + $0xd0] sm:$0xff]
    %v124 = vld [vmem:[#allocation3 + $0xd8] sm:$0xff]
    %v125 = vld [vmem:[#allocation3 + $0xe0] sm:$0xff]
    %v126 = vld [vmem:[#allocation3 + $0xe8] sm:$0xff]
    %v127 = vld [vmem:[#allocation3 + $0xf0] sm:$0xff]
    %v128 = vld [vmem:[#allocation3 + $0xf8] sm:$0xff]
    %v129 = vld [vmem:[#allocation3 + $0x100] sm:$0xff]
    %v130 = vld [vmem:[#allocation3 + $0x108] sm:$0xff]
    %v131 = vld [vmem:[#allocation3 + $0x110] sm:$0xff]
    %v132 = vld [vmem:[#allocation3 + $0x118] sm:$0xff]
    %v133 = vld [vmem:[#allocation3 + $0x120] sm:$0xff]
    %v134 = vld [vmem:[#allocation3 + $0x128] sm:$0xff]
    %v135 = vld [vmem:[#allocation3 + $0x130] sm:$0xff]
    %v136 = vld [vmem:[#allocation3 + $0x138] sm:$0xff]
    %v137 = vld [vmem:[#allocation3 + $0x140] sm:$0xff]
    %v138 = vld [vmem:[#allocation3 + $0x148] sm:$0xff]
    %v139 = vld [vmem:[#allocation3 + $0x150] sm:$0xff]
    %v140 = vld [vmem:[#allocation3 + $0x158] sm:$0xff]
    %v141 = vld [vmem:[#allocation3 + $0x160] sm:$0xff]
    %v142 = vld [vmem:[#allocation3 + $0x168] sm:$0xff]
    %v143 = vld [vmem:[#allocation3 + $0x170] sm:$0xff]
    %v144 = vld [vmem:[#allocation3 + $0x178] sm:$0xff]
    %v145 = vld [vmem:[#allocation3 + $0x180] sm:$0xff]
    %v146 = vld [vmem:[#allocation3 + $0x188] sm:$0xff]
    %v147 = vld [vmem:[#allocation3 + $0x190] sm:$0xff]
    %v148 = vld [vmem:[#allocation3 + $0x198] sm:$0xff]
    %v149 = vld [vmem:[#allocation3 + $0x1a0] sm:$0xff]
    %v150 = vld [vmem:[#allocation3 + $0x1a8] sm:$0xff]
    %v151 = vld [vmem:[#allocation3 + $0x1b0] sm:$0xff]
    %v152 = vld [vmem:[#allocation3 + $0x1b8] sm:$0xff]
    %v153 = vld [vmem:[#allocation3 + $0x1c0] sm:$0xff]
    %v154 = vld [vmem:[#allocation3 + $0x1c8] sm:$0xff]
    %v155 = vld [vmem:[#allocation3 + $0x1d0] sm:$0xff]
    %v156 = vld [vmem:[#allocation3 + $0x1d8] sm:$0xff]
    %v157 = vld [vmem:[#allocation3 + $0x1e0] sm:$0xff]
    %v158 = vld [vmem:[#allocation3 + $0x1e8] sm:$0xff]
    %v159 = vld [vmem:[#allocation3 + $0x1f0] sm:$0xff]
    %v160 = vld [vmem:[#allocation3 + $0x1f8] sm:$0xff]
    %161 = vmatprep.subr.mxu0 %v98
    %162 = vmatpush1.msra.mxu0 %v97
    %163 = vmatprep.subr.mxu0 %v102
    %164 = vmatpush1.msra.mxu0 %v101
    %165 = vmatprep.subr.mxu0 %v106
    %166 = vmatpush1.msra.mxu0 %v105
    %167 = vmatprep.subr.mxu0 %v110
    %168 = vmatpush1.msra.mxu0 %v109
    %169 = vmatprep.subr.mxu0 %v114
    %170 = vmatpush1.msra.mxu0 %v113
    %171 = vmatprep.subr.mxu0 %v118
    %172 = vmatpush1.msra.mxu0 %v117
    %173 = vmatprep.subr.mxu0 %v122
    %174 = vmatpush1.msra.mxu0 %v121
    %175 = vmatprep.subr.mxu0 %v126
    %176 = vmatpush1.msra.mxu0 %v125
    %177 = vmatprep.subr.mxu0 %v130
    %178 = vmatpush1.msra.mxu0 %v129
    %179 = vmatprep.subr.mxu0 %v134
    %180 = vmatpush1.msra.mxu0 %v133
    %181 = vmatprep.subr.mxu0 %v138
    %182 = vmatpush1.msra.mxu0 %v137
    %183 = vmatprep.subr.mxu0 %v142
    %184 = vmatpush1.msra.mxu0 %v141
    %185 = vmatprep.subr.mxu0 %v146
    %186 = vmatpush1.msra.mxu0 %v145
    %187 = vmatprep.subr.mxu0 %v150
    %188 = vmatpush1.msra.mxu0 %v149
    %189 = vmatprep.subr.mxu0 %v154
    %190 = vmatpush1.msra.mxu0 %v153
    %191 = vmatprep.subr.mxu0 %v158
    %192 = vmatpush1.msra.mxu0 %v157
    %193 = vmatprep.subr.mxu0 0.0
    %194 = vmatpush1.msra.mxu0 0.0
    %195 = vmatprep.subr.mxu0 0.0
    %196 = vmatpush1.msra.mxu0 0.0
    %197 = vmatprep.subr.mxu0 0.0
    %198 = vmatpush1.msra.mxu0 0.0
    %199 = vmatprep.subr.mxu0 0.0
    %200 = vmatpush1.msra.mxu0 0.0
    %201 = vmatprep.subr.mxu0 0.0
    %202 = vmatpush1.msra.mxu0 0.0
    %203 = vmatprep.subr.mxu0 0.0
    %204 = vmatpush1.msra.mxu0 0.0
    %205 = vmatprep.subr.mxu0 0.0
    %206 = vmatpush1.msra.mxu0 0.0
    %207 = vmatprep.subr.mxu0 0.0
    %208 = vmatpush1.msra.mxu0 0.0
    %209 = vmatprep.subr.mxu0 0.0
    %210 = vmatpush1.msra.mxu0 0.0
    %211 = vmatprep.subr.mxu0 0.0
    %212 = vmatpush1.msra.mxu0 0.0
    %213 = vmatprep.subr.mxu0 0.0
    %214 = vmatpush1.msra.mxu0 0.0
    %215 = vmatprep.subr.mxu0 0.0
    %216 = vmatpush1.msra.mxu0 0.0
    %217 = vmatprep.subr.mxu0 0.0
    %218 = vmatpush1.msra.mxu0 0.0
    %219 = vmatprep.subr.mxu0 0.0
    %220 = vmatpush1.msra.mxu0 0.0
    %221 = vmatprep.subr.mxu0 0.0
    %222 = vmatpush1.msra.mxu0 0.0
    %223 = vmatprep.subr.mxu0 0.0
    %224 = vmatpush1.msra.mxu0 0.0
    %225 = vmatprep.mubr.f32.mxu0 0.0
    %226 = vmatmul.mubr.f32.gmra.mrb[0].mxu0 0.0
    %v227 = vpop.f32.mrb[0].mxu0
    %v228 = vadd.f32 0.0, %v227
    %v229 = vpop.f32.mrb[0].mxu0
    %v230 = vadd.f32 0.0, %v229
    %231 = vdwg.mxu0
    %232 = vmatprep.subr.mxu0 %v100
    %233 = vmatpush1.msra.mxu0 %v99
    %234 = vmatprep.subr.mxu0 %v104
    %235 = vmatpush1.msra.mxu0 %v103
    %236 = vmatprep.subr.mxu0 %v108
    %237 = vmatpush1.msra.mxu0 %v107
    %238 = vmatprep.subr.mxu0 %v112
    %239 = vmatpush1.msra.mxu0 %v111
    %240 = vmatprep.subr.mxu0 %v116
    %241 = vmatpush1.msra.mxu0 %v115
    %242 = vmatprep.subr.mxu0 %v120
    %243 = vmatpush1.msra.mxu0 %v119
    %244 = vmatprep.subr.mxu0 %v124
    %245 = vmatpush1.msra.mxu0 %v123
    %246 = vmatprep.subr.mxu0 %v128
    %247 = vmatpush1.msra.mxu0 %v127
    %248 = vmatprep.subr.mxu0 %v132
    %249 = vmatpush1.msra.mxu0 %v131
    %250 = vmatprep.subr.mxu0 %v136
    %251 = vmatpush1.msra.mxu0 %v135
    %252 = vmatprep.subr.mxu0 %v140
    %253 = vmatpush1.msra.mxu0 %v139
    %254 = vmatprep.subr.mxu0 %v144
    %255 = vmatpush1.msra.mxu0 %v143
    %256 = vmatprep.subr.mxu0 %v148
    %257 = vmatpush1.msra.mxu0 %v147
    %258 = vmatprep.subr.mxu0 %v152
    %259 = vmatpush1.msra.mxu0 %v151
    %260 = vmatprep.subr.mxu0 %v156
    %261 = vmatpush1.msra.mxu0 %v155
    %262 = vmatprep.subr.mxu0 %v160
    %263 = vmatpush1.msra.mxu0 %v159
    %264 = vmatprep.subr.mxu0 0.0
    %265 = vmatpush1.msra.mxu0 0.0
    %266 = vmatprep.subr.mxu0 0.0
    %267 = vmatpush1.msra.mxu0 0.0
    %268 = vmatprep.subr.mxu0 0.0
    %269 = vmatpush1.msra.mxu0 0.0
    %270 = vmatprep.subr.mxu0 0.0
    %271 = vmatpush1.msra.mxu0 0.0
    %272 = vmatprep.subr.mxu0 0.0
    %273 = vmatpush1.msra.mxu0 0.0
    %274 = vmatprep.subr.mxu0 0.0
    %275 = vmatpush1.msra.mxu0 0.0
    %276 = vmatprep.subr.mxu0 0.0
    %277 = vmatpush1.msra.mxu0 0.0
    %278 = vmatprep.subr.mxu0 0.0
    %279 = vmatpush1.msra.mxu0 0.0
    %280 = vmatprep.subr.mxu0 0.0
    %281 = vmatpush1.msra.mxu0 0.0
    %282 = vmatprep.subr.mxu0 0.0
    %283 = vmatpush1.msra.mxu0 0.0
    %284 = vmatprep.subr.mxu0 0.0
    %285 = vmatpush1.msra.mxu0 0.0
    %286 = vmatprep.subr.mxu0 0.0
    %287 = vmatpush1.msra.mxu0 0.0
    %288 = vmatprep.subr.mxu0 0.0
    %289 = vmatpush1.msra.mxu0 0.0
    %290 = vmatprep.subr.mxu0 0.0
    %291 = vmatpush1.msra.mxu0 0.0
    %292 = vmatprep.subr.mxu0 0.0
    %293 = vmatpush1.msra.mxu0 0.0
    %294 = vmatprep.subr.mxu0 0.0
    %295 = vmatpush1.msra.mxu0 0.0
    %296 = vmatprep.mubr.f32.mxu0 0.0
    %297 = vmatmul.mubr.f32.gmra.mrb[0].mxu0 0.0
    %v298 = vpop.f32.mrb[0].mxu0
    %v299 = vadd.f32 0.0, %v298
    %v300 = vpop.f32.mrb[0].mxu0
    %v301 = vadd.f32 0.0, %v300
    %302 = vdwg.mxu0
    %v303 = vadd.f32 %v93, %v228
    %v304 = vadd.f32 %v94, %v230
    %v305 = vadd.f32 %v95, %v299
    %v306 = vadd.f32 %v96, %v301
    %v307 = vxor.u32 %v303, 2147483648
    %v308 = vxor.u32 %v304, 2147483648
    %v309 = vxor.u32 %v305, 2147483648
    %v310 = vmul.f32 %v307, 1.442695
    %v311 = vpow.pop %v310
    %v312 = vmul.f32 %v308, 1.442695
    %v313 = vpow.pop %v312
    %v314 = vmul.f32 %v309, 1.442695
    %v315 = vpow.pop %v314
    %v316 = vadd.f32 %v311, 1.0
    %v317 = vadd.f32 %v313, 1.0
    %v318 = vadd.f32 %v315, 1.0
    %v319 = vrcp.pop %v316
    %v320 = vmul.f32 1.0, %v319
    %v321 = vrcp.pop %v317
    %v322 = vmul.f32 1.0, %v321
    %v323 = vrcp.pop %v318
    %v324 = vmul.f32 1.0, %v323
    %v325 = vtanh.pop %v306
    %v326 = vmul.f32 %v322, 0.0
    %v327 = vmul.f32 %v320, %v325
    %v328 = vadd.f32 %v326, %v327
    %v329 = vtanh.pop %v328
    %v330 = vmul.f32 %v324, %v329
    %s331 = scalar_lea.vmem %s0, 8
    %v332 = vld [vmem:[%s331] sm:$0xff]
    %334 = vset.pattern.permute.xlu0 0
    %335 = vperm.xlu0 %334, %v332
    %v336 = vpop.permute.xlu0 %335
    %v338 = vmul.f32 %v336, %v50
    %v339 = vmul.f32 %v336, %v54
    %v340 = vmul.f32 %v336, %v58
    %v341 = vmul.f32 %v336, %v62
    %v342 = vadd.f32 %v338, %v76
    %v343 = vadd.f32 %v339, %v80
    %v344 = vadd.f32 %v340, %v84
    %v345 = vadd.f32 %v341, %v88
    %346 = vmatprep.subr.mxu0 %v98
    %347 = vmatpush1.msra.mxu0 %v97
    %348 = vmatprep.subr.mxu0 %v102
    %349 = vmatpush1.msra.mxu0 %v101
    %350 = vmatprep.subr.mxu0 %v106
    %351 = vmatpush1.msra.mxu0 %v105
    %352 = vmatprep.subr.mxu0 %v110
    %353 = vmatpush1.msra.mxu0 %v109
    %354 = vmatprep.subr.mxu0 %v114
    %355 = vmatpush1.msra.mxu0 %v113
    %356 = vmatprep.subr.mxu0 %v118
    %357 = vmatpush1.msra.mxu0 %v117
    %358 = vmatprep.subr.mxu0 %v122
    %359 = vmatpush1.msra.mxu0 %v121
    %360 = vmatprep.subr.mxu0 %v126
    %361 = vmatpush1.msra.mxu0 %v125
    %362 = vmatprep.subr.mxu0 %v130
    %363 = vmatpush1.msra.mxu0 %v129
    %364 = vmatprep.subr.mxu0 %v134
    %365 = vmatpush1.msra.mxu0 %v133
    %366 = vmatprep.subr.mxu0 %v138
    %367 = vmatpush1.msra.mxu0 %v137
    %368 = vmatprep.subr.mxu0 %v142
    %369 = vmatpush1.msra.mxu0 %v141
    %370 = vmatprep.subr.mxu0 %v146
    %371 = vmatpush1.msra.mxu0 %v145
    %372 = vmatprep.subr.mxu0 %v150
    %373 = vmatpush1.msra.mxu0 %v149
    %374 = vmatprep.subr.mxu0 %v154
    %375 = vmatpush1.msra.mxu0 %v153
    %376 = vmatprep.subr.mxu0 %v158
    %377 = vmatpush1.msra.mxu0 %v157
    %378 = vmatprep.subr.mxu0 0.0
    %379 = vmatpush1.msra.mxu0 0.0
    %380 = vmatprep.subr.mxu0 0.0
    %381 = vmatpush1.msra.mxu0 0.0
    %382 = vmatprep.subr.mxu0 0.0
    %383 = vmatpush1.msra.mxu0 0.0
    %384 = vmatprep.subr.mxu0 0.0
    %385 = vmatpush1.msra.mxu0 0.0
    %386 = vmatprep.subr.mxu0 0.0
    %387 = vmatpush1.msra.mxu0 0.0
    %388 = vmatprep.subr.mxu0 0.0
    %389 = vmatpush1.msra.mxu0 0.0
    %390 = vmatprep.subr.mxu0 0.0
    %391 = vmatpush1.msra.mxu0 0.0
    %392 = vmatprep.subr.mxu0 0.0
    %393 = vmatpush1.msra.mxu0 0.0
    %394 = vmatprep.subr.mxu0 0.0
    %395 = vmatpush1.msra.mxu0 0.0
    %396 = vmatprep.subr.mxu0 0.0
    %397 = vmatpush1.msra.mxu0 0.0
    %398 = vmatprep.subr.mxu0 0.0
    %399 = vmatpush1.msra.mxu0 0.0
    %400 = vmatprep.subr.mxu0 0.0
    %401 = vmatpush1.msra.mxu0 0.0
    %402 = vmatprep.subr.mxu0 0.0
    %403 = vmatpush1.msra.mxu0 0.0
    %404 = vmatprep.subr.mxu0 0.0
    %405 = vmatpush1.msra.mxu0 0.0
    %406 = vmatprep.subr.mxu0 0.0
    %407 = vmatpush1.msra.mxu0 0.0
    %408 = vmatprep.subr.mxu0 0.0
    %409 = vmatpush1.msra.mxu0 0.0
    %410 = vmatprep.mubr.f32.mxu0 0.0
    %411 = vmatmul.mubr.f32.gmra.mrb[0].mxu0 %v330
    %v412 = vpop.f32.mrb[0].mxu0
    %v413 = vadd.f32 0.0, %v412
    %v414 = vpop.f32.mrb[0].mxu0
    %v415 = vadd.f32 0.0, %v414
    %416 = vdwg.mxu0
    %417 = vmatprep.subr.mxu0 %v100
    %418 = vmatpush1.msra.mxu0 %v99
    %419 = vmatprep.subr.mxu0 %v104
    %420 = vmatpush1.msra.mxu0 %v103
    %421 = vmatprep.subr.mxu0 %v108
    %422 = vmatpush1.msra.mxu0 %v107
    %423 = vmatprep.subr.mxu0 %v112
    %424 = vmatpush1.msra.mxu0 %v111
    %425 = vmatprep.subr.mxu0 %v116
    %426 = vmatpush1.msra.mxu0 %v115
    %427 = vmatprep.subr.mxu0 %v120
    %428 = vmatpush1.msra.mxu0 %v119
    %429 = vmatprep.subr.mxu0 %v124
    %430 = vmatpush1.msra.mxu0 %v123
    %431 = vmatprep.subr.mxu0 %v128
    %432 = vmatpush1.msra.mxu0 %v127
    %433 = vmatprep.subr.mxu0 %v132
    %434 = vmatpush1.msra.mxu0 %v131
    %435 = vmatprep.subr.mxu0 %v136
    %436 = vmatpush1.msra.mxu0 %v135
    %437 = vmatprep.subr.mxu0 %v140
    %438 = vmatpush1.msra.mxu0 %v139
    %439 = vmatprep.subr.mxu0 %v144
    %440 = vmatpush1.msra.mxu0 %v143
    %441 = vmatprep.subr.mxu0 %v148
    %442 = vmatpush1.msra.mxu0 %v147
    %443 = vmatprep.subr.mxu0 %v152
    %444 = vmatpush1.msra.mxu0 %v151
    %445 = vmatprep.subr.mxu0 %v156
    %446 = vmatpush1.msra.mxu0 %v155
    %447 = vmatprep.subr.mxu0 %v160
    %448 = vmatpush1.msra.mxu0 %v159
    %449 = vmatprep.subr.mxu0 0.0
    %450 = vmatpush1.msra.mxu0 0.0
    %451 = vmatprep.subr.mxu0 0.0
    %452 = vmatpush1.msra.mxu0 0.0
    %453 = vmatprep.subr.mxu0 0.0
    %454 = vmatpush1.msra.mxu0 0.0
    %455 = vmatprep.subr.mxu0 0.0
    %456 = vmatpush1.msra.mxu0 0.0
    %457 = vmatprep.subr.mxu0 0.0
    %458 = vmatpush1.msra.mxu0 0.0
    %459 = vmatprep.subr.mxu0 0.0
    %460 = vmatpush1.msra.mxu0 0.0
    %461 = vmatprep.subr.mxu0 0.0
    %462 = vmatpush1.msra.mxu0 0.0
    %463 = vmatprep.subr.mxu0 0.0
    %464 = vmatpush1.msra.mxu0 0.0
    %465 = vmatprep.subr.mxu0 0.0
    %466 = vmatpush1.msra.mxu0 0.0
    %467 = vmatprep.subr.mxu0 0.0
    %468 = vmatpush1.msra.mxu0 0.0
    %469 = vmatprep.subr.mxu0 0.0
    %470 = vmatpush1.msra.mxu0 0.0
    %471 = vmatprep.subr.mxu0 0.0
    %472 = vmatpush1.msra.mxu0 0.0
    %473 = vmatprep.subr.mxu0 0.0
    %474 = vmatpush1.msra.mxu0 0.0
    %475 = vmatprep.subr.mxu0 0.0
    %476 = vmatpush1.msra.mxu0 0.0
    %477 = vmatprep.subr.mxu0 0.0
    %478 = vmatpush1.msra.mxu0 0.0
    %479 = vmatprep.subr.mxu0 0.0
    %480 = vmatpush1.msra.mxu0 0.0
    %481 = vmatprep.mubr.f32.mxu0 0.0
    %482 = vmatmul.mubr.f32.gmra.mrb[0].mxu0 %v330
    %v483 = vpop.f32.mrb[0].mxu0
    %v484 = vadd.f32 0.0, %v483
    %v485 = vpop.f32.mrb[0].mxu0
    %v486 = vadd.f32 0.0, %v485
    %487 = vdwg.mxu0
    %v488 = vadd.f32 %v342, %v413
    %v489 = vadd.f32 %v343, %v415
    %v490 = vadd.f32 %v344, %v484
    %v491 = vadd.f32 %v345, %v486
    %v492 = vxor.u32 %v488, 2147483648
    %v493 = vxor.u32 %v489, 2147483648
    %v494 = vxor.u32 %v490, 2147483648
    %v495 = vmul.f32 %v492, 1.442695
    %v496 = vpow.pop %v495
    %v497 = vmul.f32 %v493, 1.442695
    %v498 = vpow.pop %v497
    %v499 = vmul.f32 %v494, 1.442695
    %v500 = vpow.pop %v499
    %v501 = vadd.f32 %v496, 1.0
    %v502 = vadd.f32 %v498, 1.0
    %v503 = vadd.f32 %v500, 1.0
    %v504 = vrcp.pop %v501
    %v505 = vmul.f32 1.0, %v504
    %v506 = vrcp.pop %v502
    %v507 = vmul.f32 1.0, %v506
    %v508 = vrcp.pop %v503
    %v509 = vmul.f32 1.0, %v508
    %v510 = vtanh.pop %v491
    %v511 = vmul.f32 %v507, %v328
    %v512 = vmul.f32 %v505, %v510
    %v513 = vadd.f32 %v511, %v512
    %v514 = vtanh.pop %v513
    %v515 = vmul.f32 %v509, %v514
    %s516 = scalar_lea.vmem %s0, 16
    %v517 = vld [vmem:[%s516] sm:$0xff]
    %519 = vset.pattern.permute.xlu0 0
    %520 = vperm.xlu0 %519, %v517
    %v521 = vpop.permute.xlu0 %520
    %v523 = vmul.f32 %v521, %v50
    %v524 = vmul.f32 %v521, %v54
    %v525 = vmul.f32 %v521, %v58
    %v526 = vmul.f32 %v521, %v62
    %v527 = vadd.f32 %v523, %v76
    %v528 = vadd.f32 %v524, %v80
    %v529 = vadd.f32 %v525, %v84
    %v530 = vadd.f32 %v526, %v88
    %531 = vmatprep.subr.mxu0 %v98
    %532 = vmatpush1.msra.mxu0 %v97
    %533 = vmatprep.subr.mxu0 %v102
    %534 = vmatpush1.msra.mxu0 %v101
    %535 = vmatprep.subr.mxu0 %v106
    %536 = vmatpush1.msra.mxu0 %v105
    %537 = vmatprep.subr.mxu0 %v110
    %538 = vmatpush1.msra.mxu0 %v109
    %539 = vmatprep.subr.mxu0 %v114
    %540 = vmatpush1.msra.mxu0 %v113
    %541 = vmatprep.subr.mxu0 %v118
    %542 = vmatpush1.msra.mxu0 %v117
    %543 = vmatprep.subr.mxu0 %v122
    %544 = vmatpush1.msra.mxu0 %v121
    %545 = vmatprep.subr.mxu0 %v126
    %546 = vmatpush1.msra.mxu0 %v125
    %547 = vmatprep.subr.mxu0 %v130
    %548 = vmatpush1.msra.mxu0 %v129
    %549 = vmatprep.subr.mxu0 %v134
    %550 = vmatpush1.msra.mxu0 %v133
    %551 = vmatprep.subr.mxu0 %v138
    %552 = vmatpush1.msra.mxu0 %v137
    %553 = vmatprep.subr.mxu0 %v142
    %554 = vmatpush1.msra.mxu0 %v141
    %555 = vmatprep.subr.mxu0 %v146
    %556 = vmatpush1.msra.mxu0 %v145
    %557 = vmatprep.subr.mxu0 %v150
    %558 = vmatpush1.msra.mxu0 %v149
    %559 = vmatprep.subr.mxu0 %v154
    %560 = vmatpush1.msra.mxu0 %v153
    %561 = vmatprep.subr.mxu0 %v158
    %562 = vmatpush1.msra.mxu0 %v157
    %563 = vmatprep.subr.mxu0 0.0
    %564 = vmatpush1.msra.mxu0 0.0
    %565 = vmatprep.subr.mxu0 0.0
    %566 = vmatpush1.msra.mxu0 0.0
    %567 = vmatprep.subr.mxu0 0.0
    %568 = vmatpush1.msra.mxu0 0.0
    %569 = vmatprep.subr.mxu0 0.0
    %570 = vmatpush1.msra.mxu0 0.0
    %571 = vmatprep.subr.mxu0 0.0
    %572 = vmatpush1.msra.mxu0 0.0
    %573 = vmatprep.subr.mxu0 0.0
    %574 = vmatpush1.msra.mxu0 0.0
    %575 = vmatprep.subr.mxu0 0.0
    %576 = vmatpush1.msra.mxu0 0.0
    %577 = vmatprep.subr.mxu0 0.0
    %578 = vmatpush1.msra.mxu0 0.0
    %579 = vmatprep.subr.mxu0 0.0
    %580 = vmatpush1.msra.mxu0 0.0
    %581 = vmatprep.subr.mxu0 0.0
    %582 = vmatpush1.msra.mxu0 0.0
    %583 = vmatprep.subr.mxu0 0.0
    %584 = vmatpush1.msra.mxu0 0.0
    %585 = vmatprep.subr.mxu0 0.0
    %586 = vmatpush1.msra.mxu0 0.0
    %587 = vmatprep.subr.mxu0 0.0
    %588 = vmatpush1.msra.mxu0 0.0
    %589 = vmatprep.subr.mxu0 0.0
    %590 = vmatpush1.msra.mxu0 0.0
    %591 = vmatprep.subr.mxu0 0.0
    %592 = vmatpush1.msra.mxu0 0.0
    %593 = vmatprep.subr.mxu0 0.0
    %594 = vmatpush1.msra.mxu0 0.0
    %595 = vmatprep.mubr.f32.mxu0 0.0
    %596 = vmatmul.mubr.f32.gmra.mrb[0].mxu0 %v515
    %v597 = vpop.f32.mrb[0].mxu0
    %v598 = vadd.f32 0.0, %v597
    %v599 = vpop.f32.mrb[0].mxu0
    %v600 = vadd.f32 0.0, %v599
    %601 = vdwg.mxu0
    %602 = vmatprep.subr.mxu0 %v100
    %603 = vmatpush1.msra.mxu0 %v99
    %604 = vmatprep.subr.mxu0 %v104
    %605 = vmatpush1.msra.mxu0 %v103
    %606 = vmatprep.subr.mxu0 %v108
    %607 = vmatpush1.msra.mxu0 %v107
    %608 = vmatprep.subr.mxu0 %v112
    %609 = vmatpush1.msra.mxu0 %v111
    %610 = vmatprep.subr.mxu0 %v116
    %611 = vmatpush1.msra.mxu0 %v115
    %612 = vmatprep.subr.mxu0 %v120
    %613 = vmatpush1.msra.mxu0 %v119
    %614 = vmatprep.subr.mxu0 %v124
    %615 = vmatpush1.msra.mxu0 %v123
    %616 = vmatprep.subr.mxu0 %v128
    %617 = vmatpush1.msra.mxu0 %v127
    %618 = vmatprep.subr.mxu0 %v132
    %619 = vmatpush1.msra.mxu0 %v131
    %620 = vmatprep.subr.mxu0 %v136
    %621 = vmatpush1.msra.mxu0 %v135
    %622 = vmatprep.subr.mxu0 %v140
    %623 = vmatpush1.msra.mxu0 %v139
    %624 = vmatprep.subr.mxu0 %v144
    %625 = vmatpush1.msra.mxu0 %v143
    %626 = vmatprep.subr.mxu0 %v148
    %627 = vmatpush1.msra.mxu0 %v147
    %628 = vmatprep.subr.mxu0 %v152
    %629 = vmatpush1.msra.mxu0 %v151
    %630 = vmatprep.subr.mxu0 %v156
    %631 = vmatpush1.msra.mxu0 %v155
    %632 = vmatprep.subr.mxu0 %v160
    %633 = vmatpush1.msra.mxu0 %v159
    %634 = vmatprep.subr.mxu0 0.0
    %635 = vmatpush1.msra.mxu0 0.0
    %636 = vmatprep.subr.mxu0 0.0
    %637 = vmatpush1.msra.mxu0 0.0
    %638 = vmatprep.subr.mxu0 0.0
    %639 = vmatpush1.msra.mxu0 0.0
    %640 = vmatprep.subr.mxu0 0.0
    %641 = vmatpush1.msra.mxu0 0.0
    %642 = vmatprep.subr.mxu0 0.0
    %643 = vmatpush1.msra.mxu0 0.0
    %644 = vmatprep.subr.mxu0 0.0
    %645 = vmatpush1.msra.mxu0 0.0
    %646 = vmatprep.subr.mxu0 0.0
    %647 = vmatpush1.msra.mxu0 0.0
    %648 = vmatprep.subr.mxu0 0.0
    %649 = vmatpush1.msra.mxu0 0.0
    %650 = vmatprep.subr.mxu0 0.0
    %651 = vmatpush1.msra.mxu0 0.0
    %652 = vmatprep.subr.mxu0 0.0
    %653 = vmatpush1.msra.mxu0 0.0
    %654 = vmatprep.subr.mxu0 0.0
    %655 = vmatpush1.msra.mxu0 0.0
    %656 = vmatprep.subr.mxu0 0.0
    %657 = vmatpush1.msra.mxu0 0.0
    %658 = vmatprep.subr.mxu0 0.0
    %659 = vmatpush1.msra.mxu0 0.0
    %660 = vmatprep.subr.mxu0 0.0
    %661 = vmatpush1.msra.mxu0 0.0
    %662 = vmatprep.subr.mxu0 0.0
    %663 = vmatpush1.msra.mxu0 0.0
    %664 = vmatprep.subr.mxu0 0.0
    %665 = vmatpush1.msra.mxu0 0.0
    %666 = vmatprep.mubr.f32.mxu0 0.0
    %667 = vmatmul.mubr.f32.gmra.mrb[0].mxu0 %v515
    %v668 = vpop.f32.mrb[0].mxu0
    %v669 = vadd.f32 0.0, %v668
    %v670 = vpop.f32.mrb[0].mxu0
    %v671 = vadd.f32 0.0, %v670
    %672 = vdwg.mxu0
    %v673 = vadd.f32 %v527, %v598
    %v674 = vadd.f32 %v528, %v600
    %v675 = vadd.f32 %v529, %v669
    %v676 = vadd.f32 %v530, %v671
    %v677 = vxor.u32 %v673, 2147483648
    %v678 = vxor.u32 %v674, 2147483648
    %v679 = vxor.u32 %v675, 2147483648
    %v680 = vmul.f32 %v677, 1.442695
    %v681 = vpow.pop %v680
    %v682 = vmul.f32 %v678, 1.442695
    %v683 = vpow.pop %v682
    %v684 = vmul.f32 %v679, 1.442695
    %v685 = vpow.pop %v684
    %v686 = vadd.f32 %v681, 1.0
    %v687 = vadd.f32 %v683, 1.0
    %v688 = vadd.f32 %v685, 1.0
    %v689 = vrcp.pop %v686
    %v690 = vmul.f32 1.0, %v689
    %v691 = vrcp.pop %v687
    %v692 = vmul.f32 1.0, %v691
    %v693 = vrcp.pop %v688
    %v694 = vmul.f32 1.0, %v693
    %v695 = vtanh.pop %v676
    %v696 = vmul.f32 %v692, %v513
    %v697 = vmul.f32 %v690, %v695
    %v698 = vadd.f32 %v696, %v697
    %v699 = vtanh.pop %v698
    %v700 = vmul.f32 %v694, %v699
    %s701 = scalar_lea.vmem %s0, 24
    %v702 = vld [vmem:[%s701] sm:$0xff]
    %704 = vset.pattern.permute.xlu0 0
    %705 = vperm.xlu0 %704, %v702
    %v706 = vpop.permute.xlu0 %705
    %v708 = vmul.f32 %v706, %v50
    %v709 = vmul.f32 %v706, %v54
    %v710 = vmul.f32 %v706, %v58
    %v711 = vmul.f32 %v706, %v62
    %v712 = vadd.f32 %v708, %v76
    %v713 = vadd.f32 %v709, %v80
    %v714 = vadd.f32 %v710, %v84
    %v715 = vadd.f32 %v711, %v88
    %716 = vmatprep.subr.mxu0 %v98
    %717 = vmatpush1.msra.mxu0 %v97
    %718 = vmatprep.subr.mxu0 %v102
    %719 = vmatpush1.msra.mxu0 %v101
    %720 = vmatprep.subr.mxu0 %v106
    %721 = vmatpush1.msra.mxu0 %v105
    %722 = vmatprep.subr.mxu0 %v110
    %723 = vmatpush1.msra.mxu0 %v109
    %724 = vmatprep.subr.mxu0 %v114
    %725 = vmatpush1.msra.mxu0 %v113
    %726 = vmatprep.subr.mxu0 %v118
    %727 = vmatpush1.msra.mxu0 %v117
    %728 = vmatprep.subr.mxu0 %v122
    %729 = vmatpush1.msra.mxu0 %v121
    %730 = vmatprep.subr.mxu0 %v126
    %731 = vmatpush1.msra.mxu0 %v125
    %732 = vmatprep.subr.mxu0 %v130
    %733 = vmatpush1.msra.mxu0 %v129
    %734 = vmatprep.subr.mxu0 %v134
    %735 = vmatpush1.msra.mxu0 %v133
    %736 = vmatprep.subr.mxu0 %v138
    %737 = vmatpush1.msra.mxu0 %v137
    %738 = vmatprep.subr.mxu0 %v142
    %739 = vmatpush1.msra.mxu0 %v141
    %740 = vmatprep.subr.mxu0 %v146
    %741 = vmatpush1.msra.mxu0 %v145
    %742 = vmatprep.subr.mxu0 %v150
    %743 = vmatpush1.msra.mxu0 %v149
    %744 = vmatprep.subr.mxu0 %v154
    %745 = vmatpush1.msra.mxu0 %v153
    %746 = vmatprep.subr.mxu0 %v158
    %747 = vmatpush1.msra.mxu0 %v157
    %748 = vmatprep.subr.mxu0 0.0
    %749 = vmatpush1.msra.mxu0 0.0
    %750 = vmatprep.subr.mxu0 0.0
    %751 = vmatpush1.msra.mxu0 0.0
    %752 = vmatprep.subr.mxu0 0.0
    %753 = vmatpush1.msra.mxu0 0.0
    %754 = vmatprep.subr.mxu0 0.0
    %755 = vmatpush1.msra.mxu0 0.0
    %756 = vmatprep.subr.mxu0 0.0
    %757 = vmatpush1.msra.mxu0 0.0
    %758 = vmatprep.subr.mxu0 0.0
    %759 = vmatpush1.msra.mxu0 0.0
    %760 = vmatprep.subr.mxu0 0.0
    %761 = vmatpush1.msra.mxu0 0.0
    %762 = vmatprep.subr.mxu0 0.0
    %763 = vmatpush1.msra.mxu0 0.0
    %764 = vmatprep.subr.mxu0 0.0
    %765 = vmatpush1.msra.mxu0 0.0
    %766 = vmatprep.subr.mxu0 0.0
    %767 = vmatpush1.msra.mxu0 0.0
    %768 = vmatprep.subr.mxu0 0.0
    %769 = vmatpush1.msra.mxu0 0.0
    %770 = vmatprep.subr.mxu0 0.0
    %771 = vmatpush1.msra.mxu0 0.0
    %772 = vmatprep.subr.mxu0 0.0
    %773 = vmatpush1.msra.mxu0 0.0
    %774 = vmatprep.subr.mxu0 0.0
    %775 = vmatpush1.msra.mxu0 0.0
    %776 = vmatprep.subr.mxu0 0.0
    %777 = vmatpush1.msra.mxu0 0.0
    %778 = vmatprep.subr.mxu0 0.0
    %779 = vmatpush1.msra.mxu0 0.0
    %780 = vmatprep.mubr.f32.mxu0 0.0
    %781 = vmatmul.mubr.f32.gmra.mrb[0].mxu0 %v700
    %v782 = vpop.f32.mrb[0].mxu0
    %v783 = vadd.f32 0.0, %v782
    %v784 = vpop.f32.mrb[0].mxu0
    %v785 = vadd.f32 0.0, %v784
    %786 = vdwg.mxu0
    %787 = vmatprep.subr.mxu0 %v100
    %788 = vmatpush1.msra.mxu0 %v99
    %789 = vmatprep.subr.mxu0 %v104
    %790 = vmatpush1.msra.mxu0 %v103
    %791 = vmatprep.subr.mxu0 %v108
    %792 = vmatpush1.msra.mxu0 %v107
    %793 = vmatprep.subr.mxu0 %v112
    %794 = vmatpush1.msra.mxu0 %v111
    %795 = vmatprep.subr.mxu0 %v116
    %796 = vmatpush1.msra.mxu0 %v115
    %797 = vmatprep.subr.mxu0 %v120
    %798 = vmatpush1.msra.mxu0 %v119
    %799 = vmatprep.subr.mxu0 %v124
    %800 = vmatpush1.msra.mxu0 %v123
    %801 = vmatprep.subr.mxu0 %v128
    %802 = vmatpush1.msra.mxu0 %v127
    %803 = vmatprep.subr.mxu0 %v132
    %804 = vmatpush1.msra.mxu0 %v131
    %805 = vmatprep.subr.mxu0 %v136
    %806 = vmatpush1.msra.mxu0 %v135
    %807 = vmatprep.subr.mxu0 %v140
    %808 = vmatpush1.msra.mxu0 %v139
    %809 = vmatprep.subr.mxu0 %v144
    %810 = vmatpush1.msra.mxu0 %v143
    %811 = vmatprep.subr.mxu0 %v148
    %812 = vmatpush1.msra.mxu0 %v147
    %813 = vmatprep.subr.mxu0 %v152
    %814 = vmatpush1.msra.mxu0 %v151
    %815 = vmatprep.subr.mxu0 %v156
    %816 = vmatpush1.msra.mxu0 %v155
    %817 = vmatprep.subr.mxu0 %v160
    %818 = vmatpush1.msra.mxu0 %v159
    %819 = vmatprep.subr.mxu0 0.0
    %820 = vmatpush1.msra.mxu0 0.0
    %821 = vmatprep.subr.mxu0 0.0
    %822 = vmatpush1.msra.mxu0 0.0
    %823 = vmatprep.subr.mxu0 0.0
    %824 = vmatpush1.msra.mxu0 0.0
    %825 = vmatprep.subr.mxu0 0.0
    %826 = vmatpush1.msra.mxu0 0.0
    %827 = vmatprep.subr.mxu0 0.0
    %828 = vmatpush1.msra.mxu0 0.0
    %829 = vmatprep.subr.mxu0 0.0
    %830 = vmatpush1.msra.mxu0 0.0
    %831 = vmatprep.subr.mxu0 0.0
    %832 = vmatpush1.msra.mxu0 0.0
    %833 = vmatprep.subr.mxu0 0.0
    %834 = vmatpush1.msra.mxu0 0.0
    %835 = vmatprep.subr.mxu0 0.0
    %836 = vmatpush1.msra.mxu0 0.0
    %837 = vmatprep.subr.mxu0 0.0
    %838 = vmatpush1.msra.mxu0 0.0
    %839 = vmatprep.subr.mxu0 0.0
    %840 = vmatpush1.msra.mxu0 0.0
    %841 = vmatprep.subr.mxu0 0.0
    %842 = vmatpush1.msra.mxu0 0.0
    %843 = vmatprep.subr.mxu0 0.0
    %844 = vmatpush1.msra.mxu0 0.0
    %845 = vmatprep.subr.mxu0 0.0
    %846 = vmatpush1.msra.mxu0 0.0
    %847 = vmatprep.subr.mxu0 0.0
    %848 = vmatpush1.msra.mxu0 0.0
    %849 = vmatprep.subr.mxu0 0.0
    %850 = vmatpush1.msra.mxu0 0.0
    %851 = vmatprep.mubr.f32.mxu0 0.0
    %852 = vmatmul.mubr.f32.gmra.mrb[0].mxu0 %v700
    %v853 = vpop.f32.mrb[0].mxu0
    %v854 = vadd.f32 0.0, %v853
    %v855 = vpop.f32.mrb[0].mxu0
    %v856 = vadd.f32 0.0, %v855
    %857 = vdwg.mxu0
    %v858 = vadd.f32 %v712, %v783
    %v859 = vadd.f32 %v713, %v785
    %v860 = vadd.f32 %v714, %v854
    %v861 = vadd.f32 %v715, %v856
    %v862 = vxor.u32 %v858, 2147483648
    %v863 = vxor.u32 %v859, 2147483648
    %v864 = vxor.u32 %v860, 2147483648
    %v865 = vmul.f32 %v862, 1.442695
    %v866 = vpow.pop %v865
    %v867 = vmul.f32 %v863, 1.442695
    %v868 = vpow.pop %v867
    %v869 = vmul.f32 %v864, 1.442695
    %v870 = vpow.pop %v869
    %v871 = vadd.f32 %v866, 1.0
    %v872 = vadd.f32 %v868, 1.0
    %v873 = vadd.f32 %v870, 1.0
    %v874 = vrcp.pop %v871
    %v875 = vmul.f32 1.0, %v874
    %v876 = vrcp.pop %v872
    %v877 = vmul.f32 1.0, %v876
    %v878 = vrcp.pop %v873
    %v879 = vmul.f32 1.0, %v878
    %v880 = vtanh.pop %v861
    %v881 = vmul.f32 %v877, %v698
    %v882 = vmul.f32 %v875, %v880
    %v883 = vadd.f32 %v881, %v882
    %v884 = vtanh.pop %v883
    %v885 = vmul.f32 %v879, %v884
    %s886 = scalar_lea.vmem %s0, 32
    %v887 = vld [vmem:[%s886] sm:$0xff]
    %889 = vset.pattern.permute.xlu0 0
    %890 = vperm.xlu0 %889, %v887
    %v891 = vpop.permute.xlu0 %890
    %v893 = vmul.f32 %v891, %v50
    %v894 = vmul.f32 %v891, %v54
    %v895 = vmul.f32 %v891, %v58
    %v896 = vmul.f32 %v891, %v62
    %v897 = vadd.f32 %v893, %v76
    %v898 = vadd.f32 %v894, %v80
    %v899 = vadd.f32 %v895, %v84
    %v900 = vadd.f32 %v896, %v88
    %901 = vmatprep.subr.mxu0 %v98
    %902 = vmatpush1.msra.mxu0 %v97
    %903 = vmatprep.subr.mxu0 %v102
    %904 = vmatpush1.msra.mxu0 %v101
    %905 = vmatprep.subr.mxu0 %v106
    %906 = vmatpush1.msra.mxu0 %v105
    %907 = vmatprep.subr.mxu0 %v110
    %908 = vmatpush1.msra.mxu0 %v109
    %909 = vmatprep.subr.mxu0 %v114
    %910 = vmatpush1.msra.mxu0 %v113
    %911 = vmatprep.subr.mxu0 %v118
    %912 = vmatpush1.msra.mxu0 %v117
    %913 = vmatprep.subr.mxu0 %v122
    %914 = vmatpush1.msra.mxu0 %v121
    %915 = vmatprep.subr.mxu0 %v126
    %916 = vmatpush1.msra.mxu0 %v125
    %917 = vmatprep.subr.mxu0 %v130
    %918 = vmatpush1.msra.mxu0 %v129
    %919 = vmatprep.subr.mxu0 %v134
    %920 = vmatpush1.msra.mxu0 %v133
    %921 = vmatprep.subr.mxu0 %v138
    %922 = vmatpush1.msra.mxu0 %v137
    %923 = vmatprep.subr.mxu0 %v142
    %924 = vmatpush1.msra.mxu0 %v141
    %925 = vmatprep.subr.mxu0 %v146
    %926 = vmatpush1.msra.mxu0 %v145
    %927 = vmatprep.subr.mxu0 %v150
    %928 = vmatpush1.msra.mxu0 %v149
    %929 = vmatprep.subr.mxu0 %v154
    %930 = vmatpush1.msra.mxu0 %v153
    %931 = vmatprep.subr.mxu0 %v158
    %932 = vmatpush1.msra.mxu0 %v157
    %933 = vmatprep.subr.mxu0 0.0
    %934 = vmatpush1.msra.mxu0 0.0
    %935 = vmatprep.subr.mxu0 0.0
    %936 = vmatpush1.msra.mxu0 0.0
    %937 = vmatprep.subr.mxu0 0.0
    %938 = vmatpush1.msra.mxu0 0.0
    %939 = vmatprep.subr.mxu0 0.0
    %940 = vmatpush1.msra.mxu0 0.0
    %941 = vmatprep.subr.mxu0 0.0
    %942 = vmatpush1.msra.mxu0 0.0
    %943 = vmatprep.subr.mxu0 0.0
    %944 = vmatpush1.msra.mxu0 0.0
    %945 = vmatprep.subr.mxu0 0.0
    %946 = vmatpush1.msra.mxu0 0.0
    %947 = vmatprep.subr.mxu0 0.0
    %948 = vmatpush1.msra.mxu0 0.0
    %949 = vmatprep.subr.mxu0 0.0
    %950 = vmatpush1.msra.mxu0 0.0
    %951 = vmatprep.subr.mxu0 0.0
    %952 = vmatpush1.msra.mxu0 0.0
    %953 = vmatprep.subr.mxu0 0.0
    %954 = vmatpush1.msra.mxu0 0.0
    %955 = vmatprep.subr.mxu0 0.0
    %956 = vmatpush1.msra.mxu0 0.0
    %957 = vmatprep.subr.mxu0 0.0
    %958 = vmatpush1.msra.mxu0 0.0
    %959 = vmatprep.subr.mxu0 0.0
    %960 = vmatpush1.msra.mxu0 0.0
    %961 = vmatprep.subr.mxu0 0.0
    %962 = vmatpush1.msra.mxu0 0.0
    %963 = vmatprep.subr.mxu0 0.0
    %964 = vmatpush1.msra.mxu0 0.0
    %965 = vmatprep.mubr.f32.mxu0 0.0
    %966 = vmatmul.mubr.f32.gmra.mrb[0].mxu0 %v885
    %v967 = vpop.f32.mrb[0].mxu0
    %v968 = vadd.f32 0.0, %v967
    %v969 = vpop.f32.mrb[0].mxu0
    %v970 = vadd.f32 0.0, %v969
    %971 = vdwg.mxu0
    %972 = vmatprep.subr.mxu0 %v100
    %973 = vmatpush1.msra.mxu0 %v99
    %974 = vmatprep.subr.mxu0 %v104
    %975 = vmatpush1.msra.mxu0 %v103
    %976 = vmatprep.subr.mxu0 %v108
    %977 = vmatpush1.msra.mxu0 %v107
    %978 = vmatprep.subr.mxu0 %v112
    %979 = vmatpush1.msra.mxu0 %v111
    %980 = vmatprep.subr.mxu0 %v116
    %981 = vmatpush1.msra.mxu0 %v115
    %982 = vmatprep.subr.mxu0 %v120
    %983 = vmatpush1.msra.mxu0 %v119
    %984 = vmatprep.subr.mxu0 %v124
    %985 = vmatpush1.msra.mxu0 %v123
    %986 = vmatprep.subr.mxu0 %v128
    %987 = vmatpush1.msra.mxu0 %v127
    %988 = vmatprep.subr.mxu0 %v132
    %989 = vmatpush1.msra.mxu0 %v131
    %990 = vmatprep.subr.mxu0 %v136
    %991 = vmatpush1.msra.mxu0 %v135
    %992 = vmatprep.subr.mxu0 %v140
    %993 = vmatpush1.msra.mxu0 %v139
    %994 = vmatprep.subr.mxu0 %v144
    %995 = vmatpush1.msra.mxu0 %v143
    %996 = vmatprep.subr.mxu0 %v148
    %997 = vmatpush1.msra.mxu0 %v147
    %998 = vmatprep.subr.mxu0 %v152
    %999 = vmatpush1.msra.mxu0 %v151
    %1000 = vmatprep.subr.mxu0 %v156
    %1001 = vmatpush1.msra.mxu0 %v155
    %1002 = vmatprep.subr.mxu0 %v160
    %1003 = vmatpush1.msra.mxu0 %v159
    %1004 = vmatprep.subr.mxu0 0.0
    %1005 = vmatpush1.msra.mxu0 0.0
    %1006 = vmatprep.subr.mxu0 0.0
    %1007 = vmatpush1.msra.mxu0 0.0
    %1008 = vmatprep.subr.mxu0 0.0
    %1009 = vmatpush1.msra.mxu0 0.0
    %1010 = vmatprep.subr.mxu0 0.0
    %1011 = vmatpush1.msra.mxu0 0.0
    %1012 = vmatprep.subr.mxu0 0.0
    %1013 = vmatpush1.msra.mxu0 0.0
    %1014 = vmatprep.subr.mxu0 0.0
    %1015 = vmatpush1.msra.mxu0 0.0
    %1016 = vmatprep.subr.mxu0 0.0
    %1017 = vmatpush1.msra.mxu0 0.0
    %1018 = vmatprep.subr.mxu0 0.0
    %1019 = vmatpush1.msra.mxu0 0.0
    %1020 = vmatprep.subr.mxu0 0.0
    %1021 = vmatpush1.msra.mxu0 0.0
    %1022 = vmatprep.subr.mxu0 0.0
    %1023 = vmatpush1.msra.mxu0 0.0
    %1024 = vmatprep.subr.mxu0 0.0
    %1025 = vmatpush1.msra.mxu0 0.0
    %1026 = vmatprep.subr.mxu0 0.0
    %1027 = vmatpush1.msra.mxu0 0.0
    %1028 = vmatprep.subr.mxu0 0.0
    %1029 = vmatpush1.msra.mxu0 0.0
    %1030 = vmatprep.subr.mxu0 0.0
    %1031 = vmatpush1.msra.mxu0 0.0
    %1032 = vmatprep.subr.mxu0 0.0
    %1033 = vmatpush1.msra.mxu0 0.0
    %1034 = vmatprep.subr.mxu0 0.0
    %1035 = vmatpush1.msra.mxu0 0.0
    %1036 = vmatprep.mubr.f32.mxu0 0.0
    %1037 = vmatmul.mubr.f32.gmra.mrb[0].mxu0 %v885
    %v1038 = vpop.f32.mrb[0].mxu0
    %v1039 = vadd.f32 0.0, %v1038
    %v1040 = vpop.f32.mrb[0].mxu0
    %v1041 = vadd.f32 0.0, %v1040
    %1042 = vdwg.mxu0
    %v1043 = vadd.f32 %v897, %v968
    %v1044 = vadd.f32 %v898, %v970
    %v1045 = vadd.f32 %v899, %v1039
    %v1046 = vadd.f32 %v900, %v1041
    %v1047 = vxor.u32 %v1043, 2147483648
    %v1048 = vxor.u32 %v1044, 2147483648
    %v1049 = vxor.u32 %v1045, 2147483648
    %v1050 = vmul.f32 %v1047, 1.442695
    %v1051 = vpow.pop %v1050
    %v1052 = vmul.f32 %v1048, 1.442695
    %v1053 = vpow.pop %v1052
    %v1054 = vmul.f32 %v1049, 1.442695
    %v1055 = vpow.pop %v1054
    %v1056 = vadd.f32 %v1051, 1.0
    %v1057 = vadd.f32 %v1053, 1.0
    %v1058 = vadd.f32 %v1055, 1.0
    %v1059 = vrcp.pop %v1056
    %v1060 = vmul.f32 1.0, %v1059
    %v1061 = vrcp.pop %v1057
    %v1062 = vmul.f32 1.0, %v1061
    %v1063 = vrcp.pop %v1058
    %v1064 = vmul.f32 1.0, %v1063
    %v1065 = vtanh.pop %v1046
    %v1066 = vmul.f32 %v1062, %v883
    %v1067 = vmul.f32 %v1060, %v1065
    %v1068 = vadd.f32 %v1066, %v1067
    %v1069 = vtanh.pop %v1068
    %v1070 = vmul.f32 %v1064, %v1069
    %s1071 = scalar_lea.vmem %s0, 40
    %v1072 = vld [vmem:[%s1071] sm:$0xff]
    %1074 = vset.pattern.permute.xlu0 0
    %1075 = vperm.xlu0 %1074, %v1072
    %v1076 = vpop.permute.xlu0 %1075
    %v1078 = vmul.f32 %v1076, %v50
    %v1079 = vmul.f32 %v1076, %v54
    %v1080 = vmul.f32 %v1076, %v58
    %v1081 = vmul.f32 %v1076, %v62
    %v1082 = vadd.f32 %v1078, %v76
    %v1083 = vadd.f32 %v1079, %v80
    %v1084 = vadd.f32 %v1080, %v84
    %v1085 = vadd.f32 %v1081, %v88
    %1086 = vmatprep.subr.mxu0 %v98
    %1087 = vmatpush1.msra.mxu0 %v97
    %1088 = vmatprep.subr.mxu0 %v102
    %1089 = vmatpush1.msra.mxu0 %v101
    %1090 = vmatprep.subr.mxu0 %v106
    %1091 = vmatpush1.msra.mxu0 %v105
    %1092 = vmatprep.subr.mxu0 %v110
    %1093 = vmatpush1.msra.mxu0 %v109
    %1094 = vmatprep.subr.mxu0 %v114
    %1095 = vmatpush1.msra.mxu0 %v113
    %1096 = vmatprep.subr.mxu0 %v118
    %1097 = vmatpush1.msra.mxu0 %v117
    %1098 = vmatprep.subr.mxu0 %v122
    %1099 = vmatpush1.msra.mxu0 %v121
    %1100 = vmatprep.subr.mxu0 %v126
    %1101 = vmatpush1.msra.mxu0 %v125
    %1102 = vmatprep.subr.mxu0 %v130
    %1103 = vmatpush1.msra.mxu0 %v129
    %1104 = vmatprep.subr.mxu0 %v134
    %1105 = vmatpush1.msra.mxu0 %v133
    %1106 = vmatprep.subr.mxu0 %v138
    %1107 = vmatpush1.msra.mxu0 %v137
    %1108 = vmatprep.subr.mxu0 %v142
    %1109 = vmatpush1.msra.mxu0 %v141
    %1110 = vmatprep.subr.mxu0 %v146
    %1111 = vmatpush1.msra.mxu0 %v145
    %1112 = vmatprep.subr.mxu0 %v150
    %1113 = vmatpush1.msra.mxu0 %v149
    %1114 = vmatprep.subr.mxu0 %v154
    %1115 = vmatpush1.msra.mxu0 %v153
    %1116 = vmatprep.subr.mxu0 %v158
    %1117 = vmatpush1.msra.mxu0 %v157
    %1118 = vmatprep.subr.mxu0 0.0
    %1119 = vmatpush1.msra.mxu0 0.0
    %1120 = vmatprep.subr.mxu0 0.0
    %1121 = vmatpush1.msra.mxu0 0.0
    %1122 = vmatprep.subr.mxu0 0.0
    %1123 = vmatpush1.msra.mxu0 0.0
    %1124 = vmatprep.subr.mxu0 0.0
    %1125 = vmatpush1.msra.mxu0 0.0
    %1126 = vmatprep.subr.mxu0 0.0
    %1127 = vmatpush1.msra.mxu0 0.0
    %1128 = vmatprep.subr.mxu0 0.0
    %1129 = vmatpush1.msra.mxu0 0.0
    %1130 = vmatprep.subr.mxu0 0.0
    %1131 = vmatpush1.msra.mxu0 0.0
    %1132 = vmatprep.subr.mxu0 0.0
    %1133 = vmatpush1.msra.mxu0 0.0
    %1134 = vmatprep.subr.mxu0 0.0
    %1135 = vmatpush1.msra.mxu0 0.0
    %1136 = vmatprep.subr.mxu0 0.0
    %1137 = vmatpush1.msra.mxu0 0.0
    %1138 = vmatprep.subr.mxu0 0.0
    %1139 = vmatpush1.msra.mxu0 0.0
    %1140 = vmatprep.subr.mxu0 0.0
    %1141 = vmatpush1.msra.mxu0 0.0
    %1142 = vmatprep.subr.mxu0 0.0
    %1143 = vmatpush1.msra.mxu0 0.0
    %1144 = vmatprep.subr.mxu0 0.0
    %1145 = vmatpush1.msra.mxu0 0.0
    %1146 = vmatprep.subr.mxu0 0.0
    %1147 = vmatpush1.msra.mxu0 0.0
    %1148 = vmatprep.subr.mxu0 0.0
    %1149 = vmatpush1.msra.mxu0 0.0
    %1150 = vmatprep.mubr.f32.mxu0 0.0
    %1151 = vmatmul.mubr.f32.gmra.mrb[0].mxu0 %v1070
    %v1152 = vpop.f32.mrb[0].mxu0
    %v1153 = vadd.f32 0.0, %v1152
    %v1154 = vpop.f32.mrb[0].mxu0
    %v1155 = vadd.f32 0.0, %v1154
    %1156 = vdwg.mxu0
    %1157 = vmatprep.subr.mxu0 %v100
    %1158 = vmatpush1.msra.mxu0 %v99
    %1159 = vmatprep.subr.mxu0 %v104
    %1160 = vmatpush1.msra.mxu0 %v103
    %1161 = vmatprep.subr.mxu0 %v108
    %1162 = vmatpush1.msra.mxu0 %v107
    %1163 = vmatprep.subr.mxu0 %v112
    %1164 = vmatpush1.msra.mxu0 %v111
    %1165 = vmatprep.subr.mxu0 %v116
    %1166 = vmatpush1.msra.mxu0 %v115
    %1167 = vmatprep.subr.mxu0 %v120
    %1168 = vmatpush1.msra.mxu0 %v119
    %1169 = vmatprep.subr.mxu0 %v124
    %1170 = vmatpush1.msra.mxu0 %v123
    %1171 = vmatprep.subr.mxu0 %v128
    %1172 = vmatpush1.msra.mxu0 %v127
    %1173 = vmatprep.subr.mxu0 %v132
    %1174 = vmatpush1.msra.mxu0 %v131
    %1175 = vmatprep.subr.mxu0 %v136
    %1176 = vmatpush1.msra.mxu0 %v135
    %1177 = vmatprep.subr.mxu0 %v140
    %1178 = vmatpush1.msra.mxu0 %v139
    %1179 = vmatprep.subr.mxu0 %v144
    %1180 = vmatpush1.msra.mxu0 %v143
    %1181 = vmatprep.subr.mxu0 %v148
    %1182 = vmatpush1.msra.mxu0 %v147
    %1183 = vmatprep.subr.mxu0 %v152
    %1184 = vmatpush1.msra.mxu0 %v151
    %1185 = vmatprep.subr.mxu0 %v156
    %1186 = vmatpush1.msra.mxu0 %v155
    %1187 = vmatprep.subr.mxu0 %v160
    %1188 = vmatpush1.msra.mxu0 %v159
    %1189 = vmatprep.subr.mxu0 0.0
    %1190 = vmatpush1.msra.mxu0 0.0
    %1191 = vmatprep.subr.mxu0 0.0
    %1192 = vmatpush1.msra.mxu0 0.0
    %1193 = vmatprep.subr.mxu0 0.0
    %1194 = vmatpush1.msra.mxu0 0.0
    %1195 = vmatprep.subr.mxu0 0.0
    %1196 = vmatpush1.msra.mxu0 0.0
    %1197 = vmatprep.subr.mxu0 0.0
    %1198 = vmatpush1.msra.mxu0 0.0
    %1199 = vmatprep.subr.mxu0 0.0
    %1200 = vmatpush1.msra.mxu0 0.0
    %1201 = vmatprep.subr.mxu0 0.0
    %1202 = vmatpush1.msra.mxu0 0.0
    %1203 = vmatprep.subr.mxu0 0.0
    %1204 = vmatpush1.msra.mxu0 0.0
    %1205 = vmatprep.subr.mxu0 0.0
    %1206 = vmatpush1.msra.mxu0 0.0
    %1207 = vmatprep.subr.mxu0 0.0
    %1208 = vmatpush1.msra.mxu0 0.0
    %1209 = vmatprep.subr.mxu0 0.0
    %1210 = vmatpush1.msra.mxu0 0.0
    %1211 = vmatprep.subr.mxu0 0.0
    %1212 = vmatpush1.msra.mxu0 0.0
    %1213 = vmatprep.subr.mxu0 0.0
    %1214 = vmatpush1.msra.mxu0 0.0
    %1215 = vmatprep.subr.mxu0 0.0
    %1216 = vmatpush1.msra.mxu0 0.0
    %1217 = vmatprep.subr.mxu0 0.0
    %1218 = vmatpush1.msra.mxu0 0.0
    %1219 = vmatprep.subr.mxu0 0.0
    %1220 = vmatpush1.msra.mxu0 0.0
    %1221 = vmatprep.mubr.f32.mxu0 0.0
    %1222 = vmatmul.mubr.f32.gmra.mrb[0].mxu0 %v1070
    %v1223 = vpop.f32.mrb[0].mxu0
    %v1224 = vadd.f32 0.0, %v1223
    %v1225 = vpop.f32.mrb[0].mxu0
    %v1226 = vadd.f32 0.0, %v1225
    %1227 = vdwg.mxu0
    %v1228 = vadd.f32 %v1082, %v1153
    %v1229 = vadd.f32 %v1083, %v1155
    %v1230 = vadd.f32 %v1084, %v1224
    %v1231 = vadd.f32 %v1085, %v1226
    %v1232 = vxor.u32 %v1228, 2147483648
    %v1233 = vxor.u32 %v1229, 2147483648
    %v1234 = vxor.u32 %v1230, 2147483648
    %v1235 = vmul.f32 %v1232, 1.442695
    %v1236 = vpow.pop %v1235
    %v1237 = vmul.f32 %v1233, 1.442695
    %v1238 = vpow.pop %v1237
    %v1239 = vmul.f32 %v1234, 1.442695
    %v1240 = vpow.pop %v1239
    %v1241 = vadd.f32 %v1236, 1.0
    %v1242 = vadd.f32 %v1238, 1.0
    %v1243 = vadd.f32 %v1240, 1.0
    %v1244 = vrcp.pop %v1241
    %v1245 = vmul.f32 1.0, %v1244
    %v1246 = vrcp.pop %v1242
    %v1247 = vmul.f32 1.0, %v1246
    %v1248 = vrcp.pop %v1243
    %v1249 = vmul.f32 1.0, %v1248
    %v1250 = vtanh.pop %v1231
    %v1251 = vmul.f32 %v1247, %v1068
    %v1252 = vmul.f32 %v1245, %v1250
    %v1253 = vadd.f32 %v1251, %v1252
    %v1254 = vtanh.pop %v1253
    %v1255 = vmul.f32 %v1249, %v1254
    %s1256 = scalar_lea.vmem %s0, 48
    %v1257 = vld [vmem:[%s1256] sm:$0xff]
    %1259 = vset.pattern.permute.xlu0 0
    %1260 = vperm.xlu0 %1259, %v1257
    %v1261 = vpop.permute.xlu0 %1260
    %v1263 = vmul.f32 %v1261, %v50
    %v1264 = vmul.f32 %v1261, %v54
    %v1265 = vmul.f32 %v1261, %v58
    %v1266 = vmul.f32 %v1261, %v62
    %v1267 = vadd.f32 %v1263, %v76
    %v1268 = vadd.f32 %v1264, %v80
    %v1269 = vadd.f32 %v1265, %v84
    %v1270 = vadd.f32 %v1266, %v88
    %1271 = vmatprep.subr.mxu0 %v98
    %1272 = vmatpush1.msra.mxu0 %v97
    %1273 = vmatprep.subr.mxu0 %v102
    %1274 = vmatpush1.msra.mxu0 %v101
    %1275 = vmatprep.subr.mxu0 %v106
    %1276 = vmatpush1.msra.mxu0 %v105
    %1277 = vmatprep.subr.mxu0 %v110
    %1278 = vmatpush1.msra.mxu0 %v109
    %1279 = vmatprep.subr.mxu0 %v114
    %1280 = vmatpush1.msra.mxu0 %v113
    %1281 = vmatprep.subr.mxu0 %v118
    %1282 = vmatpush1.msra.mxu0 %v117
    %1283 = vmatprep.subr.mxu0 %v122
    %1284 = vmatpush1.msra.mxu0 %v121
    %1285 = vmatprep.subr.mxu0 %v126
    %1286 = vmatpush1.msra.mxu0 %v125
    %1287 = vmatprep.subr.mxu0 %v130
    %1288 = vmatpush1.msra.mxu0 %v129
    %1289 = vmatprep.subr.mxu0 %v134
    %1290 = vmatpush1.msra.mxu0 %v133
    %1291 = vmatprep.subr.mxu0 %v138
    %1292 = vmatpush1.msra.mxu0 %v137
    %1293 = vmatprep.subr.mxu0 %v142
    %1294 = vmatpush1.msra.mxu0 %v141
    %1295 = vmatprep.subr.mxu0 %v146
    %1296 = vmatpush1.msra.mxu0 %v145
    %1297 = vmatprep.subr.mxu0 %v150
    %1298 = vmatpush1.msra.mxu0 %v149
    %1299 = vmatprep.subr.mxu0 %v154
    %1300 = vmatpush1.msra.mxu0 %v153
    %1301 = vmatprep.subr.mxu0 %v158
    %1302 = vmatpush1.msra.mxu0 %v157
    %1303 = vmatprep.subr.mxu0 0.0
    %1304 = vmatpush1.msra.mxu0 0.0
    %1305 = vmatprep.subr.mxu0 0.0
    %1306 = vmatpush1.msra.mxu0 0.0
    %1307 = vmatprep.subr.mxu0 0.0
    %1308 = vmatpush1.msra.mxu0 0.0
    %1309 = vmatprep.subr.mxu0 0.0
    %1310 = vmatpush1.msra.mxu0 0.0
    %1311 = vmatprep.subr.mxu0 0.0
    %1312 = vmatpush1.msra.mxu0 0.0
    %1313 = vmatprep.subr.mxu0 0.0
    %1314 = vmatpush1.msra.mxu0 0.0
    %1315 = vmatprep.subr.mxu0 0.0
    %1316 = vmatpush1.msra.mxu0 0.0
    %1317 = vmatprep.subr.mxu0 0.0
    %1318 = vmatpush1.msra.mxu0 0.0
    %1319 = vmatprep.subr.mxu0 0.0
    %1320 = vmatpush1.msra.mxu0 0.0
    %1321 = vmatprep.subr.mxu0 0.0
    %1322 = vmatpush1.msra.mxu0 0.0
    %1323 = vmatprep.subr.mxu0 0.0
    %1324 = vmatpush1.msra.mxu0 0.0
    %1325 = vmatprep.subr.mxu0 0.0
    %1326 = vmatpush1.msra.mxu0 0.0
    %1327 = vmatprep.subr.mxu0 0.0
    %1328 = vmatpush1.msra.mxu0 0.0
    %1329 = vmatprep.subr.mxu0 0.0
    %1330 = vmatpush1.msra.mxu0 0.0
    %1331 = vmatprep.subr.mxu0 0.0
    %1332 = vmatpush1.msra.mxu0 0.0
    %1333 = vmatprep.subr.mxu0 0.0
    %1334 = vmatpush1.msra.mxu0 0.0
    %1335 = vmatprep.mubr.f32.mxu0 0.0
    %1336 = vmatmul.mubr.f32.gmra.mrb[0].mxu0 %v1255
    %v1337 = vpop.f32.mrb[0].mxu0
    %v1338 = vadd.f32 0.0, %v1337
    %v1339 = vpop.f32.mrb[0].mxu0
    %v1340 = vadd.f32 0.0, %v1339
    %1341 = vdwg.mxu0
    %1342 = vmatprep.subr.mxu0 %v100
    %1343 = vmatpush1.msra.mxu0 %v99
    %1344 = vmatprep.subr.mxu0 %v104
    %1345 = vmatpush1.msra.mxu0 %v103
    %1346 = vmatprep.subr.mxu0 %v108
    %1347 = vmatpush1.msra.mxu0 %v107
    %1348 = vmatprep.subr.mxu0 %v112
    %1349 = vmatpush1.msra.mxu0 %v111
    %1350 = vmatprep.subr.mxu0 %v116
    %1351 = vmatpush1.msra.mxu0 %v115
    %1352 = vmatprep.subr.mxu0 %v120
    %1353 = vmatpush1.msra.mxu0 %v119
    %1354 = vmatprep.subr.mxu0 %v124
    %1355 = vmatpush1.msra.mxu0 %v123
    %1356 = vmatprep.subr.mxu0 %v128
    %1357 = vmatpush1.msra.mxu0 %v127
    %1358 = vmatprep.subr.mxu0 %v132
    %1359 = vmatpush1.msra.mxu0 %v131
    %1360 = vmatprep.subr.mxu0 %v136
    %1361 = vmatpush1.msra.mxu0 %v135
    %1362 = vmatprep.subr.mxu0 %v140
    %1363 = vmatpush1.msra.mxu0 %v139
    %1364 = vmatprep.subr.mxu0 %v144
    %1365 = vmatpush1.msra.mxu0 %v143
    %1366 = vmatprep.subr.mxu0 %v148
    %1367 = vmatpush1.msra.mxu0 %v147
    %1368 = vmatprep.subr.mxu0 %v152
    %1369 = vmatpush1.msra.mxu0 %v151
    %1370 = vmatprep.subr.mxu0 %v156
    %1371 = vmatpush1.msra.mxu0 %v155
    %1372 = vmatprep.subr.mxu0 %v160
    %1373 = vmatpush1.msra.mxu0 %v159
    %1374 = vmatprep.subr.mxu0 0.0
    %1375 = vmatpush1.msra.mxu0 0.0
    %1376 = vmatprep.subr.mxu0 0.0
    %1377 = vmatpush1.msra.mxu0 0.0
    %1378 = vmatprep.subr.mxu0 0.0
    %1379 = vmatpush1.msra.mxu0 0.0
    %1380 = vmatprep.subr.mxu0 0.0
    %1381 = vmatpush1.msra.mxu0 0.0
    %1382 = vmatprep.subr.mxu0 0.0
    %1383 = vmatpush1.msra.mxu0 0.0
    %1384 = vmatprep.subr.mxu0 0.0
    %1385 = vmatpush1.msra.mxu0 0.0
    %1386 = vmatprep.subr.mxu0 0.0
    %1387 = vmatpush1.msra.mxu0 0.0
    %1388 = vmatprep.subr.mxu0 0.0
    %1389 = vmatpush1.msra.mxu0 0.0
    %1390 = vmatprep.subr.mxu0 0.0
    %1391 = vmatpush1.msra.mxu0 0.0
    %1392 = vmatprep.subr.mxu0 0.0
    %1393 = vmatpush1.msra.mxu0 0.0
    %1394 = vmatprep.subr.mxu0 0.0
    %1395 = vmatpush1.msra.mxu0 0.0
    %1396 = vmatprep.subr.mxu0 0.0
    %1397 = vmatpush1.msra.mxu0 0.0
    %1398 = vmatprep.subr.mxu0 0.0
    %1399 = vmatpush1.msra.mxu0 0.0
    %1400 = vmatprep.subr.mxu0 0.0
    %1401 = vmatpush1.msra.mxu0 0.0
    %1402 = vmatprep.subr.mxu0 0.0
    %1403 = vmatpush1.msra.mxu0 0.0
    %1404 = vmatprep.subr.mxu0 0.0
    %1405 = vmatpush1.msra.mxu0 0.0
    %1406 = vmatprep.mubr.f32.mxu0 0.0
    %1407 = vmatmul.mubr.f32.gmra.mrb[0].mxu0 %v1255
    %v1408 = vpop.f32.mrb[0].mxu0
    %v1409 = vadd.f32 0.0, %v1408
    %v1410 = vpop.f32.mrb[0].mxu0
    %v1411 = vadd.f32 0.0, %v1410
    %1412 = vdwg.mxu0
    %v1413 = vadd.f32 %v1267, %v1338
    %v1414 = vadd.f32 %v1268, %v1340
    %v1415 = vadd.f32 %v1269, %v1409
    %v1416 = vadd.f32 %v1270, %v1411
    %v1417 = vxor.u32 %v1413, 2147483648
    %v1418 = vxor.u32 %v1414, 2147483648
    %v1419 = vxor.u32 %v1415, 2147483648
    %v1420 = vmul.f32 %v1417, 1.442695
    %v1421 = vpow.pop %v1420
    %v1422 = vmul.f32 %v1418, 1.442695
    %v1423 = vpow.pop %v1422
    %v1424 = vmul.f32 %v1419, 1.442695
    %v1425 = vpow.pop %v1424
    %v1426 = vadd.f32 %v1421, 1.0
    %v1427 = vadd.f32 %v1423, 1.0
    %v1428 = vadd.f32 %v1425, 1.0
    %v1429 = vrcp.pop %v1426
    %v1430 = vmul.f32 1.0, %v1429
    %v1431 = vrcp.pop %v1427
    %v1432 = vmul.f32 1.0, %v1431
    %v1433 = vrcp.pop %v1428
    %v1434 = vmul.f32 1.0, %v1433
    %v1435 = vtanh.pop %v1416
    %v1436 = vmul.f32 %v1432, %v1253
    %v1437 = vmul.f32 %v1430, %v1435
    %v1438 = vadd.f32 %v1436, %v1437
    %v1439 = vtanh.pop %v1438
    %v1440 = vmul.f32 %v1434, %v1439
    %s1441 = scalar_lea.vmem %s0, 56
    %v1442 = vld [vmem:[%s1441] sm:$0xff]
    %1444 = vset.pattern.permute.xlu0 0
    %1445 = vperm.xlu0 %1444, %v1442
    %v1446 = vpop.permute.xlu0 %1445
    %v1448 = vmul.f32 %v1446, %v50
    %v1449 = vmul.f32 %v1446, %v54
    %v1450 = vmul.f32 %v1446, %v58
    %v1451 = vmul.f32 %v1446, %v62
    %v1452 = vadd.f32 %v1448, %v76
    %v1453 = vadd.f32 %v1449, %v80
    %v1454 = vadd.f32 %v1450, %v84
    %v1455 = vadd.f32 %v1451, %v88
    %1456 = vmatprep.subr.mxu0 %v98
    %1457 = vmatpush1.msra.mxu0 %v97
    %1458 = vmatprep.subr.mxu0 %v102
    %1459 = vmatpush1.msra.mxu0 %v101
    %1460 = vmatprep.subr.mxu0 %v106
    %1461 = vmatpush1.msra.mxu0 %v105
    %1462 = vmatprep.subr.mxu0 %v110
    %1463 = vmatpush1.msra.mxu0 %v109
    %1464 = vmatprep.subr.mxu0 %v114
    %1465 = vmatpush1.msra.mxu0 %v113
    %1466 = vmatprep.subr.mxu0 %v118
    %1467 = vmatpush1.msra.mxu0 %v117
    %1468 = vmatprep.subr.mxu0 %v122
    %1469 = vmatpush1.msra.mxu0 %v121
    %1470 = vmatprep.subr.mxu0 %v126
    %1471 = vmatpush1.msra.mxu0 %v125
    %1472 = vmatprep.subr.mxu0 %v130
    %1473 = vmatpush1.msra.mxu0 %v129
    %1474 = vmatprep.subr.mxu0 %v134
    %1475 = vmatpush1.msra.mxu0 %v133
    %1476 = vmatprep.subr.mxu0 %v138
    %1477 = vmatpush1.msra.mxu0 %v137
    %1478 = vmatprep.subr.mxu0 %v142
    %1479 = vmatpush1.msra.mxu0 %v141
    %1480 = vmatprep.subr.mxu0 %v146
    %1481 = vmatpush1.msra.mxu0 %v145
    %1482 = vmatprep.subr.mxu0 %v150
    %1483 = vmatpush1.msra.mxu0 %v149
    %1484 = vmatprep.subr.mxu0 %v154
    %1485 = vmatpush1.msra.mxu0 %v153
    %1486 = vmatprep.subr.mxu0 %v158
    %1487 = vmatpush1.msra.mxu0 %v157
    %1488 = vmatprep.subr.mxu0 0.0
    %1489 = vmatpush1.msra.mxu0 0.0
    %1490 = vmatprep.subr.mxu0 0.0
    %1491 = vmatpush1.msra.mxu0 0.0
    %1492 = vmatprep.subr.mxu0 0.0
    %1493 = vmatpush1.msra.mxu0 0.0
    %1494 = vmatprep.subr.mxu0 0.0
    %1495 = vmatpush1.msra.mxu0 0.0
    %1496 = vmatprep.subr.mxu0 0.0
    %1497 = vmatpush1.msra.mxu0 0.0
    %1498 = vmatprep.subr.mxu0 0.0
    %1499 = vmatpush1.msra.mxu0 0.0
    %1500 = vmatprep.subr.mxu0 0.0
    %1501 = vmatpush1.msra.mxu0 0.0
    %1502 = vmatprep.subr.mxu0 0.0
    %1503 = vmatpush1.msra.mxu0 0.0
    %1504 = vmatprep.subr.mxu0 0.0
    %1505 = vmatpush1.msra.mxu0 0.0
    %1506 = vmatprep.subr.mxu0 0.0
    %1507 = vmatpush1.msra.mxu0 0.0
    %1508 = vmatprep.subr.mxu0 0.0
    %1509 = vmatpush1.msra.mxu0 0.0
    %1510 = vmatprep.subr.mxu0 0.0
    %1511 = vmatpush1.msra.mxu0 0.0
    %1512 = vmatprep.subr.mxu0 0.0
    %1513 = vmatpush1.msra.mxu0 0.0
    %1514 = vmatprep.subr.mxu0 0.0
    %1515 = vmatpush1.msra.mxu0 0.0
    %1516 = vmatprep.subr.mxu0 0.0
    %1517 = vmatpush1.msra.mxu0 0.0
    %1518 = vmatprep.subr.mxu0 0.0
    %1519 = vmatpush1.msra.mxu0 0.0
    %1520 = vmatprep.mubr.f32.mxu0 0.0
    %1521 = vmatmul.mubr.f32.gmra.mrb[0].mxu0 %v1440
    %v1522 = vpop.f32.mrb[0].mxu0
    %v1523 = vadd.f32 0.0, %v1522
    %v1524 = vpop.f32.mrb[0].mxu0
    %v1525 = vadd.f32 0.0, %v1524
    %1526 = vdwg.mxu0
    %1527 = vmatprep.subr.mxu0 %v100
    %1528 = vmatpush1.msra.mxu0 %v99
    %1529 = vmatprep.subr.mxu0 %v104
    %1530 = vmatpush1.msra.mxu0 %v103
    %1531 = vmatprep.subr.mxu0 %v108
    %1532 = vmatpush1.msra.mxu0 %v107
    %1533 = vmatprep.subr.mxu0 %v112
    %1534 = vmatpush1.msra.mxu0 %v111
    %1535 = vmatprep.subr.mxu0 %v116
    %1536 = vmatpush1.msra.mxu0 %v115
    %1537 = vmatprep.subr.mxu0 %v120
    %1538 = vmatpush1.msra.mxu0 %v119
    %1539 = vmatprep.subr.mxu0 %v124
    %1540 = vmatpush1.msra.mxu0 %v123
    %1541 = vmatprep.subr.mxu0 %v128
    %1542 = vmatpush1.msra.mxu0 %v127
    %1543 = vmatprep.subr.mxu0 %v132
    %1544 = vmatpush1.msra.mxu0 %v131
    %1545 = vmatprep.subr.mxu0 %v136
    %1546 = vmatpush1.msra.mxu0 %v135
    %1547 = vmatprep.subr.mxu0 %v140
    %1548 = vmatpush1.msra.mxu0 %v139
    %1549 = vmatprep.subr.mxu0 %v144
    %1550 = vmatpush1.msra.mxu0 %v143
    %1551 = vmatprep.subr.mxu0 %v148
    %1552 = vmatpush1.msra.mxu0 %v147
    %1553 = vmatprep.subr.mxu0 %v152
    %1554 = vmatpush1.msra.mxu0 %v151
    %1555 = vmatprep.subr.mxu0 %v156
    %1556 = vmatpush1.msra.mxu0 %v155
    %1557 = vmatprep.subr.mxu0 %v160
    %1558 = vmatpush1.msra.mxu0 %v159
    %1559 = vmatprep.subr.mxu0 0.0
    %1560 = vmatpush1.msra.mxu0 0.0
    %1561 = vmatprep.subr.mxu0 0.0
    %1562 = vmatpush1.msra.mxu0 0.0
    %1563 = vmatprep.subr.mxu0 0.0
    %1564 = vmatpush1.msra.mxu0 0.0
    %1565 = vmatprep.subr.mxu0 0.0
    %1566 = vmatpush1.msra.mxu0 0.0
    %1567 = vmatprep.subr.mxu0 0.0
    %1568 = vmatpush1.msra.mxu0 0.0
    %1569 = vmatprep.subr.mxu0 0.0
    %1570 = vmatpush1.msra.mxu0 0.0
    %1571 = vmatprep.subr.mxu0 0.0
    %1572 = vmatpush1.msra.mxu0 0.0
    %1573 = vmatprep.subr.mxu0 0.0
    %1574 = vmatpush1.msra.mxu0 0.0
    %1575 = vmatprep.subr.mxu0 0.0
    %1576 = vmatpush1.msra.mxu0 0.0
    %1577 = vmatprep.subr.mxu0 0.0
    %1578 = vmatpush1.msra.mxu0 0.0
    %1579 = vmatprep.subr.mxu0 0.0
    %1580 = vmatpush1.msra.mxu0 0.0
    %1581 = vmatprep.subr.mxu0 0.0
    %1582 = vmatpush1.msra.mxu0 0.0
    %1583 = vmatprep.subr.mxu0 0.0
    %1584 = vmatpush1.msra.mxu0 0.0
    %1585 = vmatprep.subr.mxu0 0.0
    %1586 = vmatpush1.msra.mxu0 0.0
    %1587 = vmatprep.subr.mxu0 0.0
    %1588 = vmatpush1.msra.mxu0 0.0
    %1589 = vmatprep.subr.mxu0 0.0
    %1590 = vmatpush1.msra.mxu0 0.0
    %1591 = vmatprep.mubr.f32.mxu0 0.0
    %1592 = vmatmul.mubr.f32.gmra.mrb[0].mxu0 %v1440
    %v1593 = vpop.f32.mrb[0].mxu0
    %v1594 = vadd.f32 0.0, %v1593
    %v1595 = vpop.f32.mrb[0].mxu0
    %v1596 = vadd.f32 0.0, %v1595
    %1597 = vdwg.mxu0
    %v1598 = vadd.f32 %v1452, %v1523
    %v1599 = vadd.f32 %v1453, %v1525
    %v1600 = vadd.f32 %v1454, %v1594
    %v1601 = vadd.f32 %v1455, %v1596
    %v1602 = vxor.u32 %v1598, 2147483648
    %v1603 = vxor.u32 %v1599, 2147483648
    %v1604 = vxor.u32 %v1600, 2147483648
    %v1605 = vmul.f32 %v1602, 1.442695
    %v1606 = vpow.pop %v1605
    %v1607 = vmul.f32 %v1603, 1.442695
    %v1608 = vpow.pop %v1607
    %v1609 = vmul.f32 %v1604, 1.442695
    %v1610 = vpow.pop %v1609
    %v1611 = vadd.f32 %v1606, 1.0
    %v1612 = vadd.f32 %v1608, 1.0
    %v1613 = vadd.f32 %v1610, 1.0
    %v1614 = vrcp.pop %v1611
    %v1615 = vmul.f32 1.0, %v1614
    %v1616 = vrcp.pop %v1612
    %v1617 = vmul.f32 1.0, %v1616
    %v1618 = vrcp.pop %v1613
    %v1619 = vmul.f32 1.0, %v1618
    %v1620 = vtanh.pop %v1601
    %v1621 = vmul.f32 %v1617, %v1438
    %v1622 = vmul.f32 %v1615, %v1620
    %v1623 = vadd.f32 %v1621, %v1622
    %v1624 = vtanh.pop %v1623
    %v1625 = vmul.f32 %v1619, %v1624
    %v1626 = vld [vmem:[%s4] sm:$0x1]
    %v1628 = vlaneseq
    %v1629 = vshrl.u32 %v1628, 7
    %v1630 = vsub.s32 0, %v1629
    %v1631 = vrot.slane %v1626, %v1630
    %v1633 = vmul.f32 %v1625, %v1631
    %1634 = vadd.xlane.f32.xlu0 %v1633
    %v1635 = vpop.xlane.xlu0 %1634
    %v1636 = vld [vmem:[#allocation2] sm:$0x1]
    %v1638 = vlaneseq
    %v1639 = vshrl.u32 %v1638, 7
    %v1640 = vsub.s32 0, %v1639
    %v1641 = vrot.slane %v1636, %v1640
    %v1643 = vadd.f32 %v1635, %v1641
    %vm1644 = vcmask 1024
    %1645 = vst.msk [vmem:[%s6] sm:$0x3] %vm1644, %v1643
    // Predicated region
    $region30: #{lstm_model_forward.1} parent=1 // pred_check
      _
    $region31: #{lstm_model_forward.1} parent=1 // pred_check_branch
      %1647 = sbr.rel (0) target = $region33
    $region32: #{lstm_model_forward.1} parent=1 // pred_region
      _
    $region33: #{lstm_model_forward.1} parent=1 // pred_fallthru
      _
    // Predicated region
    $region34: #{lstm_model_forward.1} parent=1 // pred_check
      _
    $region35: #{lstm_model_forward.1} parent=1 // pred_check_branch
      %1649 = sbr.rel (0) target = $region37
    $region36: #{lstm_model_forward.1} parent=1 // pred_region
      _
    $region37: #{lstm_model_forward.1} parent=1 // pred_fallthru
      _
    %1650 = vsyncpa [#allocation4], 1

</llo_original>
